<compile_context>
chip_gen: v5e
topology: v5e:2x2
jax: 0.10.0
libtpu: 0.0.40
codegen_flags: <defaults>
</compile_context>

<pallas_src>
import jax
import jax.numpy as jnp
import numpy as np
from jax import lax
from jax.experimental import pallas as pl
from jax.experimental.pallas import tpu as pltpu


# --------------------------------------------------------------------------
# Fused Pallas kernel: bidirectional LSTM + ReLU + both linear heads
# --------------------------------------------------------------------------
def _nan_to_num(v):
    # torch.nan_to_num(x, nan=0.0, posinf=None, neginf=None):
    #   nan -> 0, +inf -> finfo.max, -inf -> finfo.min
    big = jnp.finfo(jnp.float32).max
    v = jnp.where(jnp.isnan(v), jnp.float32(0.0), v)
    return jnp.clip(v, -big, big)


def lstm_encoder_kernel(seqlen_ref,                       # SMEM (1,) int32
                        x_ref,                            # VMEM (T, B) f32
                        wih_f_ref, whh_f_ref, b_f_ref,    # (1,4H) (H,4H) (1,4H)
                        wih_r_ref, whh_r_ref, b_r_ref,
                        w_head_ref, b_head_ref,           # (2H, 2L) (1, 2L)
                        out_ref):                         # VMEM (B, 2L)
    T, B = x_ref.shape
    H = whh_f_ref.shape[0]
    seqlen = seqlen_ref[0]                                # true max(lengths)

    # ---- precompute (parallel pass, off the serial critical path) ---------
    x = _nan_to_num(x_ref[...])                                        # (T, B)
    xw_f = x[:, :, None] * wih_f_ref[...][None, :, :] + b_f_ref[...][None, :, :]
    xw_r = x[:, :, None] * wih_r_ref[...][None, :, :] + b_r_ref[...][None, :, :]
    whh_f = whh_f_ref[...].astype(jnp.bfloat16)                        # (H, 4H)
    whh_r = whh_r_ref[...].astype(jnp.bfloat16)

    def cell(gates, c):
        # gates: (B, 4H) f32, PyTorch gate order (i, f, g, o).
        # Note: H=32 gate slices are 32-lane sub-slices of the 128-lane tile;
        # picking H as a multiple of 128 would remove the per-step lane
        # selects, but H is a model hyper-parameter here.
        i_g = jax.nn.sigmoid(gates[:, 0 * H:1 * H])
        f_g = jax.nn.sigmoid(gates[:, 1 * H:2 * H])
        g_g = jnp.tanh(gates[:, 2 * H:3 * H])
        o_g = jax.nn.sigmoid(gates[:, 3 * H:4 * H])
        c_new = f_g * c + i_g * g_g
        return o_g * jnp.tanh(c_new), c_new

    zeros = jnp.zeros((B, H), jnp.float32)
    h_f, c_f, h_r, c_r = zeros, zeros, zeros, zeros

    # ---- fused bidirectional recurrence (fully unrolled; T static, small) --
    # Timesteps >= seqlen (bucket padding) are masked out: the forward chain
    # simply stops updating, the reverse chain stays at its zero init until
    # the real sequence starts -> bit-exact with trimming at seqlen.
    for i in range(T):
        t_r = T - 1 - i
        gates_f = xw_f[i] + jnp.dot(h_f.astype(jnp.bfloat16), whh_f,
                                    preferred_element_type=jnp.float32)
        gates_r = xw_r[t_r] + jnp.dot(h_r.astype(jnp.bfloat16), whh_r,
                                      preferred_element_type=jnp.float32)
        hf_n, cf_n = cell(gates_f, c_f)
        hr_n, cr_n = cell(gates_r, c_r)

        mask_f = jnp.full((B, H), i, jnp.int32) < seqlen
        mask_r = jnp.full((B, H), t_r, jnp.int32) < seqlen
        h_f = jnp.where(mask_f, hf_n, h_f)
        c_f = jnp.where(mask_f, cf_n, c_f)
        h_r = jnp.where(mask_r, hr_n, h_r)
        c_r = jnp.where(mask_r, cr_n, c_r)

    # ---- epilogue: torch `hid = h_n.reshape(-1, 2H)` + ReLU + fused heads --
    # h_n is (2, B, H) = [h_f rows; h_r rows]; torch's reshape puts stacked
    # rows (2r, 2r+1) side by side in row r (mixing direction & batch).  We
    # reproduce it with static row slices (no in-kernel reshape) and split the
    # concatenated head weight so  out = hid @ W_head + b_head  exactly.
    rows = [h_f[b:b + 1] for b in range(B)] + [h_r[b:b + 1] for b in range(B)]
    left = jnp.maximum(
        jnp.concatenate([rows[2 * r] for r in range(B)], axis=0), 0.0)      # (B, H)
    right = jnp.maximum(
        jnp.concatenate([rows[2 * r + 1] for r in range(B)], axis=0), 0.0)  # (B, H)

    w_head = w_head_ref[...]
    out = (jnp.dot(left.astype(jnp.bfloat16), w_head[:H].astype(jnp.bfloat16),
                   preferred_element_type=jnp.float32)
           + jnp.dot(right.astype(jnp.bfloat16), w_head[H:].astype(jnp.bfloat16),
                     preferred_element_type=jnp.float32)
           + b_head_ref[...])
    out_ref[...] = out                                                   # (B, 2L)


# --------------------------------------------------------------------------
# Wrapper (glue: bucketed trimming, transpose, head output split)
# --------------------------------------------------------------------------
def lstm_encoder_forward(x, lengths, kp):
    H, L = kp["hidden_dim"], kp["latent_dims"]
    B, T_total = x.shape

    # glue: torch trims to max(lengths).  We bucket the static shape up to a
    # multiple of 8 (caps recompiles); exact semantics come from the in-kernel
    # mask against the true max length.
    max_len = int(jnp.max(lengths))                   # host sync (as in torch)
    t_pad = min(-(-max_len // 8) * 8, T_total)

    x_tm = jnp.transpose(x[:, :t_pad].astype(jnp.float32))        # (T_pad, B)
    seqlen = jnp.full((1,), max_len, jnp.int32)

    smem = pl.BlockSpec(memory_space=pltpu.MemorySpace.SMEM)
    vmem = lambda: pl.BlockSpec(memory_space=pltpu.MemorySpace.VMEM)

    out = pl.pallas_call(
        lstm_encoder_kernel,
        out_shape=jax.ShapeDtypeStruct((B, 2 * L), jnp.float32),
        in_specs=[smem] + [vmem() for _ in range(9)],
        out_specs=vmem(),
    )(seqlen, x_tm,
      kp["wih_f"], kp["whh_f"], kp["b_f"],
      kp["wih_r"], kp["whh_r"], kp["b_r"],
      kp["whead"], kp["bhead"])

    mu, logvar = out[:, :L], out[:, L:]
    return mu, logvar, lengths


# --------------------------------------------------------------------------
# Deterministic parameter init (PyTorch-native shapes + kernel-friendly forms)
# --------------------------------------------------------------------------
def init_params(key, hidden_dim, latent_dims):
    H, L = hidden_dim, latent_dims
    ks = jax.random.split(key, 12)
    b_lstm = 1.0 / np.sqrt(H)
    b_fc = 1.0 / np.sqrt(2 * H)
    u = lambda k, shape, b: jax.random.uniform(k, shape, jnp.float32, -b, b)

    tp = dict(  # PyTorch-native shapes
        w_ih_f=u(ks[0], (4 * H, 1), b_lstm), w_hh_f=u(ks[1], (4 * H, H), b_lstm),
        b_ih_f=u(ks[2], (4 * H,), b_lstm),   b_hh_f=u(ks[3], (4 * H,), b_lstm),
        w_ih_r=u(ks[4], (4 * H, 1), b_lstm), w_hh_r=u(ks[5], (4 * H, H), b_lstm),
        b_ih_r=u(ks[6], (4 * H,), b_lstm),   b_hh_r=u(ks[7], (4 * H,), b_lstm),
        w_mu=u(ks[8], (L, 2 * H), b_fc),     b_mu=u(ks[9], (L,), b_fc),
        w_lv=u(ks[10], (L, 2 * H), b_fc),    b_lv=u(ks[11], (L,), b_fc),
    )
    kp = dict(
        hidden_dim=H, latent_dims=L,
        wih_f=tp["w_ih_f"].T.reshape(1, 4 * H), whh_f=tp["w_hh_f"].T,
        b_f=(tp["b_ih_f"] + tp["b_hh_f"])[None, :],
        wih_r=tp["w_ih_r"].T.reshape(1, 4 * H), whh_r=tp["w_hh_r"].T,
        b_r=(tp["b_ih_r"] + tp["b_hh_r"])[None, :],
        # both heads concatenated: one (2H, 2L) matmul, one (B, 2L) output slab
        whead=jnp.concatenate([tp["w_mu"].T, tp["w_lv"].T], axis=1),
        bhead=jnp.concatenate([tp["b_mu"], tp["b_lv"]], axis=0)[None, :],
    )
    return tp, kp


# --------------------------------------------------------------------------
# Pure-JAX f32 reference (mirrors the PyTorch forward exactly)
# --------------------------------------------------------------------------
def reference_forward(x, lengths, tp, H):
    max_len = int(jnp.max(lengths))
    x = jnp.nan_to_num(x.astype(jnp.float32))[:, :max_len]
    B, T = x.shape

    def run_dir(w_ih, w_hh, b_ih, b_hh, reverse):
        xs = jnp.transpose(x)                       # (T, B)
        if reverse:
            xs = xs[::-1]

        def step(carry, xt):
            h, c = carry
            gates = xt[:, None] * w_ih[:, 0][None, :] + h @ w_hh.T + b_ih + b_hh
            i_g = jax.nn.sigmoid(gates[:, :H])
            f_g = jax.nn.sigmoid(gates[:, H:2 * H])
            g_g = jnp.tanh(gates[:, 2 * H:3 * H])
            o_g = jax.nn.sigmoid(gates[:, 3 * H:])
            c = f_g * c + i_g * g_g
            h = o_g * jnp.tanh(c)
            return (h, c), None

        (h, _), _ = lax.scan(step, (jnp.zeros((B, H)), jnp.zeros((B, H))), xs)
        return h

    h_f = run_dir(tp["w_ih_f"], tp["w_hh_f"], tp["b_ih_f"], tp["b_hh_f"], False)
    h_r = run_dir(tp["w_ih_r"], tp["w_hh_r"], tp["b_ih_r"], tp["b_hh_r"], True)
    hn = jnp.stack([h_f, h_r], axis=0)              # (2, B, H)
    hid = jax.nn.relu(hn.reshape(-1, 2 * H))
    mu = hid @ tp["w_mu"].T + tp["b_mu"]
    lv = hid @ tp["w_lv"].T + tp["b_lv"]
    return mu, lv


# --------------------------------------------------------------------------
if __name__ == "__main__":
    key = jax.random.PRNGKey(0)
    B, T_total, H, L = 2, 12, 32, 16
    k_x, k_p = jax.random.split(key)

    x = jax.random.normal(k_x, (B, T_total), jnp.float32)
    x = x.at[0, 2].set(jnp.nan)                     # exercise nan_to_num
    lengths = jnp.array([7, 5], jnp.int32)          # max_len=7 -> bucket T=8
                                                    # (exercises the mask path)

    torch_p, kern_p = init_params(k_p, H, L)

    mu, logvar, lens_out = lstm_encoder_forward(x, lengths, kern_p)
    jax.block_until_ready((mu, logvar))

    ref_mu, ref_lv = reference_forward(x, lengths, torch_p, H)
    assert mu.shape == (B, L) and logvar.shape == (B, L)
    # bf16 matmul operands (f32 accumulation) in the kernel vs f32 reference.
    np.testing.assert_allclose(np.asarray(mu), np.asarray(ref_mu),
                               rtol=2e-2, atol=2e-2)
    np.testing.assert_allclose(np.asarray(logvar), np.asarray(ref_lv),
                               rtol=2e-2, atol=2e-2)
    print("KERNEL_OK")
</pallas_src>

<mosaic_0001>
module attributes {stable_mosaic.version = 11 : i64} {
  func.func @lstm_encoder_kernel(%arg0: memref<1xi32, #tpu.memory_space<smem>>, %arg1: memref<8x2xf32, #tpu.memory_space<vmem>>, %arg2: memref<1x128xf32, #tpu.memory_space<vmem>>, %arg3: memref<32x128xf32, #tpu.memory_space<vmem>>, %arg4: memref<1x128xf32, #tpu.memory_space<vmem>>, %arg5: memref<1x128xf32, #tpu.memory_space<vmem>>, %arg6: memref<32x128xf32, #tpu.memory_space<vmem>>, %arg7: memref<1x128xf32, #tpu.memory_space<vmem>>, %arg8: memref<64x32xf32, #tpu.memory_space<vmem>>, %arg9: memref<1x32xf32, #tpu.memory_space<vmem>>, %arg10: memref<2x32xf32, #tpu.memory_space<vmem>>) attributes {dimension_semantics = [], scalar_prefetch = 0 : i64, scratch_operands = 0 : i64, tpu.core_type = #tpu.core_type<tc>} {
    %c0 = arith.constant 0 : index
    %0 = memref.load %arg0[%c0] : memref<1xi32, #tpu.memory_space<smem>>
    %c0_0 = arith.constant 0 : index
    %c0_1 = arith.constant 0 : index
    %1 = vector.load %arg1[%c0_0, %c0_1] : memref<8x2xf32, #tpu.memory_space<vmem>>, vector<8x2xf32>
    %2 = arith.cmpf one, %1, %1 : vector<8x2xf32>
    %cst = arith.constant 0.000000e+00 : f32
    %3 = vector.broadcast %cst : f32 to vector<8x2xf32>
    %4 = arith.select %2, %3, %1 : vector<8x2xi1>, vector<8x2xf32>
    %cst_2 = arith.constant -3.40282347E+38 : f32
    %cst_3 = arith.constant 3.40282347E+38 : f32
    %5 = vector.broadcast %cst_2 : f32 to vector<8x2xf32>
    %6 = arith.maximumf %5, %4 : vector<8x2xf32>
    %7 = vector.broadcast %cst_3 : f32 to vector<8x2xf32>
    %8 = arith.minimumf %7, %6 : vector<8x2xf32>
    %9 = vector.shape_cast %8 : vector<8x2xf32> to vector<8x2x1xf32>
    %c0_4 = arith.constant 0 : index
    %c0_5 = arith.constant 0 : index
    %10 = vector.load %arg2[%c0_4, %c0_5] : memref<1x128xf32, #tpu.memory_space<vmem>>, vector<1x128xf32>
    %11 = vector.shape_cast %10 : vector<1x128xf32> to vector<1x1x128xf32>
    %12 = vector.broadcast %9 : vector<8x2x1xf32> to vector<8x2x128xf32>
    %13 = vector.broadcast %11 : vector<1x1x128xf32> to vector<8x2x128xf32>
    %14 = arith.mulf %12, %13 : vector<8x2x128xf32>
    %c0_6 = arith.constant 0 : index
    %c0_7 = arith.constant 0 : index
    %15 = vector.load %arg4[%c0_6, %c0_7] : memref<1x128xf32, #tpu.memory_space<vmem>>, vector<1x128xf32>
    %16 = vector.shape_cast %15 : vector<1x128xf32> to vector<1x1x128xf32>
    %17 = vector.broadcast %16 : vector<1x1x128xf32> to vector<8x2x128xf32>
    %18 = arith.addf %14, %17 : vector<8x2x128xf32>
    %19 = vector.shape_cast %8 : vector<8x2xf32> to vector<8x2x1xf32>
    %c0_8 = arith.constant 0 : index
    %c0_9 = arith.constant 0 : index
    %20 = vector.load %arg5[%c0_8, %c0_9] : memref<1x128xf32, #tpu.memory_space<vmem>>, vector<1x128xf32>
    %21 = vector.shape_cast %20 : vector<1x128xf32> to vector<1x1x128xf32>
    %22 = vector.broadcast %19 : vector<8x2x1xf32> to vector<8x2x128xf32>
    %23 = vector.broadcast %21 : vector<1x1x128xf32> to vector<8x2x128xf32>
    %24 = arith.mulf %22, %23 : vector<8x2x128xf32>
    %c0_10 = arith.constant 0 : index
    %c0_11 = arith.constant 0 : index
    %25 = vector.load %arg7[%c0_10, %c0_11] : memref<1x128xf32, #tpu.memory_space<vmem>>, vector<1x128xf32>
    %26 = vector.shape_cast %25 : vector<1x128xf32> to vector<1x1x128xf32>
    %27 = vector.broadcast %26 : vector<1x1x128xf32> to vector<8x2x128xf32>
    %28 = arith.addf %24, %27 : vector<8x2x128xf32>
    %c0_12 = arith.constant 0 : index
    %c0_13 = arith.constant 0 : index
    %29 = vector.load %arg3[%c0_12, %c0_13] : memref<32x128xf32, #tpu.memory_space<vmem>>, vector<32x128xf32>
    %30 = arith.truncf %29 : vector<32x128xf32> to vector<32x128xbf16>
    %c0_14 = arith.constant 0 : index
    %c0_15 = arith.constant 0 : index
    %31 = vector.load %arg6[%c0_14, %c0_15] : memref<32x128xf32, #tpu.memory_space<vmem>>, vector<32x128xf32>
    %32 = arith.truncf %31 : vector<32x128xf32> to vector<32x128xbf16>
    %cst_16 = arith.constant 0.000000e+00 : f32
    %33 = vector.broadcast %cst_16 : f32 to vector<2x32xf32>
    %34 = vector.extract_strided_slice %18 {offsets = [0, 0, 0], sizes = [1, 2, 128], strides = [1, 1, 1]} : vector<8x2x128xf32> to vector<1x2x128xf32>
    %35 = vector.shape_cast %34 : vector<1x2x128xf32> to vector<2x128xf32>
    %36 = arith.truncf %33 : vector<2x32xf32> to vector<2x32xbf16>
    %cst_17 = arith.constant dense<0.000000e+00> : vector<2x128xf32>
    %37 = tpu.matmul %36, %30, %cst_17 {dimension_numbers = #tpu.dot_dimension_numbers<[1], [0], [0], [1], [0, 0, 1, 1], [], []>} : vector<2x32xbf16>, vector<32x128xbf16>, vector<2x128xf32> -> vector<2x128xf32>
    %38 = arith.addf %35, %37 : vector<2x128xf32>
    %39 = vector.extract_strided_slice %28 {offsets = [7, 0, 0], sizes = [1, 2, 128], strides = [1, 1, 1]} : vector<8x2x128xf32> to vector<1x2x128xf32>
    %40 = vector.shape_cast %39 : vector<1x2x128xf32> to vector<2x128xf32>
    %41 = arith.truncf %33 : vector<2x32xf32> to vector<2x32xbf16>
    %cst_18 = arith.constant dense<0.000000e+00> : vector<2x128xf32>
    %42 = tpu.matmul %41, %32, %cst_18 {dimension_numbers = #tpu.dot_dimension_numbers<[1], [0], [0], [1], [0, 0, 1, 1], [], []>} : vector<2x32xbf16>, vector<32x128xbf16>, vector<2x128xf32> -> vector<2x128xf32>
    %43 = arith.addf %40, %42 : vector<2x128xf32>
    %44 = vector.extract_strided_slice %38 {offsets = [0, 0], sizes = [2, 32], strides = [1, 1]} : vector<2x128xf32> to vector<2x32xf32>
    %45 = arith.negf %44 : vector<2x32xf32>
    %46 = math.exp %45 : vector<2x32xf32>
    %cst_19 = arith.constant 1.000000e+00 : f32
    %47 = vector.broadcast %cst_19 : f32 to vector<2x32xf32>
    %48 = arith.addf %47, %46 : vector<2x32xf32>
    %49 = arith.divf %47, %48 : vector<2x32xf32>
    %50 = vector.extract_strided_slice %38 {offsets = [0, 32], sizes = [2, 32], strides = [1, 1]} : vector<2x128xf32> to vector<2x32xf32>
    %51 = arith.negf %50 : vector<2x32xf32>
    %52 = math.exp %51 : vector<2x32xf32>
    %cst_20 = arith.constant 1.000000e+00 : f32
    %53 = vector.broadcast %cst_20 : f32 to vector<2x32xf32>
    %54 = arith.addf %53, %52 : vector<2x32xf32>
    %55 = arith.divf %53, %54 : vector<2x32xf32>
    %56 = vector.extract_strided_slice %38 {offsets = [0, 64], sizes = [2, 32], strides = [1, 1]} : vector<2x128xf32> to vector<2x32xf32>
    %57 = math.tanh %56 : vector<2x32xf32>
    %58 = vector.extract_strided_slice %38 {offsets = [0, 96], sizes = [2, 32], strides = [1, 1]} : vector<2x128xf32> to vector<2x32xf32>
    %59 = arith.negf %58 : vector<2x32xf32>
    %60 = math.exp %59 : vector<2x32xf32>
    %cst_21 = arith.constant 1.000000e+00 : f32
    %61 = vector.broadcast %cst_21 : f32 to vector<2x32xf32>
    %62 = arith.addf %61, %60 : vector<2x32xf32>
    %63 = arith.divf %61, %62 : vector<2x32xf32>
    %64 = arith.mulf %55, %33 : vector<2x32xf32>
    %65 = arith.mulf %49, %57 : vector<2x32xf32>
    %66 = arith.addf %64, %65 : vector<2x32xf32>
    %67 = math.tanh %66 : vector<2x32xf32>
    %68 = arith.mulf %63, %67 : vector<2x32xf32>
    %69 = vector.extract_strided_slice %43 {offsets = [0, 0], sizes = [2, 32], strides = [1, 1]} : vector<2x128xf32> to vector<2x32xf32>
    %70 = arith.negf %69 : vector<2x32xf32>
    %71 = math.exp %70 : vector<2x32xf32>
    %cst_22 = arith.constant 1.000000e+00 : f32
    %72 = vector.broadcast %cst_22 : f32 to vector<2x32xf32>
    %73 = arith.addf %72, %71 : vector<2x32xf32>
    %74 = arith.divf %72, %73 : vector<2x32xf32>
    %75 = vector.extract_strided_slice %43 {offsets = [0, 32], sizes = [2, 32], strides = [1, 1]} : vector<2x128xf32> to vector<2x32xf32>
    %76 = arith.negf %75 : vector<2x32xf32>
    %77 = math.exp %76 : vector<2x32xf32>
    %cst_23 = arith.constant 1.000000e+00 : f32
    %78 = vector.broadcast %cst_23 : f32 to vector<2x32xf32>
    %79 = arith.addf %78, %77 : vector<2x32xf32>
    %80 = arith.divf %78, %79 : vector<2x32xf32>
    %81 = vector.extract_strided_slice %43 {offsets = [0, 64], sizes = [2, 32], strides = [1, 1]} : vector<2x128xf32> to vector<2x32xf32>
    %82 = math.tanh %81 : vector<2x32xf32>
    %83 = vector.extract_strided_slice %43 {offsets = [0, 96], sizes = [2, 32], strides = [1, 1]} : vector<2x128xf32> to vector<2x32xf32>
    %84 = arith.negf %83 : vector<2x32xf32>
    %85 = math.exp %84 : vector<2x32xf32>
    %cst_24 = arith.constant 1.000000e+00 : f32
    %86 = vector.broadcast %cst_24 : f32 to vector<2x32xf32>
    %87 = arith.addf %86, %85 : vector<2x32xf32>
    %88 = arith.divf %86, %87 : vector<2x32xf32>
    %89 = arith.mulf %80, %33 : vector<2x32xf32>
    %90 = arith.mulf %74, %82 : vector<2x32xf32>
    %91 = arith.addf %89, %90 : vector<2x32xf32>
    %92 = math.tanh %91 : vector<2x32xf32>
    %93 = arith.mulf %88, %92 : vector<2x32xf32>
    %c0_i32 = arith.constant 0 : i32
    %94 = vector.broadcast %c0_i32 : i32 to vector<2x32xi32>
    %95 = vector.broadcast %0 : i32 to vector<2x32xi32>
    %96 = arith.cmpi slt, %94, %95 : vector<2x32xi32>
    %c7_i32 = arith.constant 7 : i32
    %97 = vector.broadcast %c7_i32 : i32 to vector<2x32xi32>
    %98 = vector.broadcast %0 : i32 to vector<2x32xi32>
    %99 = arith.cmpi slt, %97, %98 : vector<2x32xi32>
    %100 = arith.select %96, %68, %33 : vector<2x32xi1>, vector<2x32xf32>
    %101 = arith.select %96, %66, %33 : vector<2x32xi1>, vector<2x32xf32>
    %102 = arith.select %99, %93, %33 : vector<2x32xi1>, vector<2x32xf32>
    %103 = arith.select %99, %91, %33 : vector<2x32xi1>, vector<2x32xf32>
    %104 = vector.extract_strided_slice %18 {offsets = [1, 0, 0], sizes = [1, 2, 128], strides = [1, 1, 1]} : vector<8x2x128xf32> to vector<1x2x128xf32>
    %105 = vector.shape_cast %104 : vector<1x2x128xf32> to vector<2x128xf32>
    %106 = arith.truncf %100 : vector<2x32xf32> to vector<2x32xbf16>
    %cst_25 = arith.constant dense<0.000000e+00> : vector<2x128xf32>
    %107 = tpu.matmul %106, %30, %cst_25 {dimension_numbers = #tpu.dot_dimension_numbers<[1], [0], [0], [1], [0, 0, 1, 1], [], []>} : vector<2x32xbf16>, vector<32x128xbf16>, vector<2x128xf32> -> vector<2x128xf32>
    %108 = arith.addf %105, %107 : vector<2x128xf32>
    %109 = vector.extract_strided_slice %28 {offsets = [6, 0, 0], sizes = [1, 2, 128], strides = [1, 1, 1]} : vector<8x2x128xf32> to vector<1x2x128xf32>
    %110 = vector.shape_cast %109 : vector<1x2x128xf32> to vector<2x128xf32>
    %111 = arith.truncf %102 : vector<2x32xf32> to vector<2x32xbf16>
    %cst_26 = arith.constant dense<0.000000e+00> : vector<2x128xf32>
    %112 = tpu.matmul %111, %32, %cst_26 {dimension_numbers = #tpu.dot_dimension_numbers<[1], [0], [0], [1], [0, 0, 1, 1], [], []>} : vector<2x32xbf16>, vector<32x128xbf16>, vector<2x128xf32> -> vector<2x128xf32>
    %113 = arith.addf %110, %112 : vector<2x128xf32>
    %114 = vector.extract_strided_slice %108 {offsets = [0, 0], sizes = [2, 32], strides = [1, 1]} : vector<2x128xf32> to vector<2x32xf32>
    %115 = arith.negf %114 : vector<2x32xf32>
    %116 = math.exp %115 : vector<2x32xf32>
    %cst_27 = arith.constant 1.000000e+00 : f32
    %117 = vector.broadcast %cst_27 : f32 to vector<2x32xf32>
    %118 = arith.addf %117, %116 : vector<2x32xf32>
    %119 = arith.divf %117, %118 : vector<2x32xf32>
    %120 = vector.extract_strided_slice %108 {offsets = [0, 32], sizes = [2, 32], strides = [1, 1]} : vector<2x128xf32> to vector<2x32xf32>
    %121 = arith.negf %120 : vector<2x32xf32>
    %122 = math.exp %121 : vector<2x32xf32>
    %cst_28 = arith.constant 1.000000e+00 : f32
    %123 = vector.broadcast %cst_28 : f32 to vector<2x32xf32>
    %124 = arith.addf %123, %122 : vector<2x32xf32>
    %125 = arith.divf %123, %124 : vector<2x32xf32>
    %126 = vector.extract_strided_slice %108 {offsets = [0, 64], sizes = [2, 32], strides = [1, 1]} : vector<2x128xf32> to vector<2x32xf32>
    %127 = math.tanh %126 : vector<2x32xf32>
    %128 = vector.extract_strided_slice %108 {offsets = [0, 96], sizes = [2, 32], strides = [1, 1]} : vector<2x128xf32> to vector<2x32xf32>
    %129 = arith.negf %128 : vector<2x32xf32>
    %130 = math.exp %129 : vector<2x32xf32>
    %cst_29 = arith.constant 1.000000e+00 : f32
    %131 = vector.broadcast %cst_29 : f32 to vector<2x32xf32>
    %132 = arith.addf %131, %130 : vector<2x32xf32>
    %133 = arith.divf %131, %132 : vector<2x32xf32>
    %134 = arith.mulf %125, %101 : vector<2x32xf32>
    %135 = arith.mulf %119, %127 : vector<2x32xf32>
    %136 = arith.addf %134, %135 : vector<2x32xf32>
    %137 = math.tanh %136 : vector<2x32xf32>
    %138 = arith.mulf %133, %137 : vector<2x32xf32>
    %139 = vector.extract_strided_slice %113 {offsets = [0, 0], sizes = [2, 32], strides = [1, 1]} : vector<2x128xf32> to vector<2x32xf32>
    %140 = arith.negf %139 : vector<2x32xf32>
    %141 = math.exp %140 : vector<2x32xf32>
    %cst_30 = arith.constant 1.000000e+00 : f32
    %142 = vector.broadcast %cst_30 : f32 to vector<2x32xf32>
    %143 = arith.addf %142, %141 : vector<2x32xf32>
    %144 = arith.divf %142, %143 : vector<2x32xf32>
    %145 = vector.extract_strided_slice %113 {offsets = [0, 32], sizes = [2, 32], strides = [1, 1]} : vector<2x128xf32> to vector<2x32xf32>
    %146 = arith.negf %145 : vector<2x32xf32>
    %147 = math.exp %146 : vector<2x32xf32>
    %cst_31 = arith.constant 1.000000e+00 : f32
    %148 = vector.broadcast %cst_31 : f32 to vector<2x32xf32>
    %149 = arith.addf %148, %147 : vector<2x32xf32>
    %150 = arith.divf %148, %149 : vector<2x32xf32>
    %151 = vector.extract_strided_slice %113 {offsets = [0, 64], sizes = [2, 32], strides = [1, 1]} : vector<2x128xf32> to vector<2x32xf32>
    %152 = math.tanh %151 : vector<2x32xf32>
    %153 = vector.extract_strided_slice %113 {offsets = [0, 96], sizes = [2, 32], strides = [1, 1]} : vector<2x128xf32> to vector<2x32xf32>
    %154 = arith.negf %153 : vector<2x32xf32>
    %155 = math.exp %154 : vector<2x32xf32>
    %cst_32 = arith.constant 1.000000e+00 : f32
    %156 = vector.broadcast %cst_32 : f32 to vector<2x32xf32>
    %157 = arith.addf %156, %155 : vector<2x32xf32>
    %158 = arith.divf %156, %157 : vector<2x32xf32>
    %159 = arith.mulf %150, %103 : vector<2x32xf32>
    %160 = arith.mulf %144, %152 : vector<2x32xf32>
    %161 = arith.addf %159, %160 : vector<2x32xf32>
    %162 = math.tanh %161 : vector<2x32xf32>
    %163 = arith.mulf %158, %162 : vector<2x32xf32>
    %c1_i32 = arith.constant 1 : i32
    %164 = vector.broadcast %c1_i32 : i32 to vector<2x32xi32>
    %165 = vector.broadcast %0 : i32 to vector<2x32xi32>
    %166 = arith.cmpi slt, %164, %165 : vector<2x32xi32>
    %c6_i32 = arith.constant 6 : i32
    %167 = vector.broadcast %c6_i32 : i32 to vector<2x32xi32>
    %168 = vector.broadcast %0 : i32 to vector<2x32xi32>
    %169 = arith.cmpi slt, %167, %168 : vector<2x32xi32>
    %170 = arith.select %166, %138, %100 : vector<2x32xi1>, vector<2x32xf32>
    %171 = arith.select %166, %136, %101 : vector<2x32xi1>, vector<2x32xf32>
    %172 = arith.select %169, %163, %102 : vector<2x32xi1>, vector<2x32xf32>
    %173 = arith.select %169, %161, %103 : vector<2x32xi1>, vector<2x32xf32>
    %174 = vector.extract_strided_slice %18 {offsets = [2, 0, 0], sizes = [1, 2, 128], strides = [1, 1, 1]} : vector<8x2x128xf32> to vector<1x2x128xf32>
    %175 = vector.shape_cast %174 : vector<1x2x128xf32> to vector<2x128xf32>
    %176 = arith.truncf %170 : vector<2x32xf32> to vector<2x32xbf16>
    %cst_33 = arith.constant dense<0.000000e+00> : vector<2x128xf32>
    %177 = tpu.matmul %176, %30, %cst_33 {dimension_numbers = #tpu.dot_dimension_numbers<[1], [0], [0], [1], [0, 0, 1, 1], [], []>} : vector<2x32xbf16>, vector<32x128xbf16>, vector<2x128xf32> -> vector<2x128xf32>
    %178 = arith.addf %175, %177 : vector<2x128xf32>
    %179 = vector.extract_strided_slice %28 {offsets = [5, 0, 0], sizes = [1, 2, 128], strides = [1, 1, 1]} : vector<8x2x128xf32> to vector<1x2x128xf32>
    %180 = vector.shape_cast %179 : vector<1x2x128xf32> to vector<2x128xf32>
    %181 = arith.truncf %172 : vector<2x32xf32> to vector<2x32xbf16>
    %cst_34 = arith.constant dense<0.000000e+00> : vector<2x128xf32>
    %182 = tpu.matmul %181, %32, %cst_34 {dimension_numbers = #tpu.dot_dimension_numbers<[1], [0], [0], [1], [0, 0, 1, 1], [], []>} : vector<2x32xbf16>, vector<32x128xbf16>, vector<2x128xf32> -> vector<2x128xf32>
    %183 = arith.addf %180, %182 : vector<2x128xf32>
    %184 = vector.extract_strided_slice %178 {offsets = [0, 0], sizes = [2, 32], strides = [1, 1]} : vector<2x128xf32> to vector<2x32xf32>
    %185 = arith.negf %184 : vector<2x32xf32>
    %186 = math.exp %185 : vector<2x32xf32>
    %cst_35 = arith.constant 1.000000e+00 : f32
    %187 = vector.broadcast %cst_35 : f32 to vector<2x32xf32>
    %188 = arith.addf %187, %186 : vector<2x32xf32>
    %189 = arith.divf %187, %188 : vector<2x32xf32>
    %190 = vector.extract_strided_slice %178 {offsets = [0, 32], sizes = [2, 32], strides = [1, 1]} : vector<2x128xf32> to vector<2x32xf32>
    %191 = arith.negf %190 : vector<2x32xf32>
    %192 = math.exp %191 : vector<2x32xf32>
    %cst_36 = arith.constant 1.000000e+00 : f32
    %193 = vector.broadcast %cst_36 : f32 to vector<2x32xf32>
    %194 = arith.addf %193, %192 : vector<2x32xf32>
    %195 = arith.divf %193, %194 : vector<2x32xf32>
    %196 = vector.extract_strided_slice %178 {offsets = [0, 64], sizes = [2, 32], strides = [1, 1]} : vector<2x128xf32> to vector<2x32xf32>
    %197 = math.tanh %196 : vector<2x32xf32>
    %198 = vector.extract_strided_slice %178 {offsets = [0, 96], sizes = [2, 32], strides = [1, 1]} : vector<2x128xf32> to vector<2x32xf32>
    %199 = arith.negf %198 : vector<2x32xf32>
    %200 = math.exp %199 : vector<2x32xf32>
    %cst_37 = arith.constant 1.000000e+00 : f32
    %201 = vector.broadcast %cst_37 : f32 to vector<2x32xf32>
    %202 = arith.addf %201, %200 : vector<2x32xf32>
    %203 = arith.divf %201, %202 : vector<2x32xf32>
    %204 = arith.mulf %195, %171 : vector<2x32xf32>
    %205 = arith.mulf %189, %197 : vector<2x32xf32>
    %206 = arith.addf %204, %205 : vector<2x32xf32>
    %207 = math.tanh %206 : vector<2x32xf32>
    %208 = arith.mulf %203, %207 : vector<2x32xf32>
    %209 = vector.extract_strided_slice %183 {offsets = [0, 0], sizes = [2, 32], strides = [1, 1]} : vector<2x128xf32> to vector<2x32xf32>
    %210 = arith.negf %209 : vector<2x32xf32>
    %211 = math.exp %210 : vector<2x32xf32>
    %cst_38 = arith.constant 1.000000e+00 : f32
    %212 = vector.broadcast %cst_38 : f32 to vector<2x32xf32>
    %213 = arith.addf %212, %211 : vector<2x32xf32>
    %214 = arith.divf %212, %213 : vector<2x32xf32>
    %215 = vector.extract_strided_slice %183 {offsets = [0, 32], sizes = [2, 32], strides = [1, 1]} : vector<2x128xf32> to vector<2x32xf32>
    %216 = arith.negf %215 : vector<2x32xf32>
    %217 = math.exp %216 : vector<2x32xf32>
    %cst_39 = arith.constant 1.000000e+00 : f32
    %218 = vector.broadcast %cst_39 : f32 to vector<2x32xf32>
    %219 = arith.addf %218, %217 : vector<2x32xf32>
    %220 = arith.divf %218, %219 : vector<2x32xf32>
    %221 = vector.extract_strided_slice %183 {offsets = [0, 64], sizes = [2, 32], strides = [1, 1]} : vector<2x128xf32> to vector<2x32xf32>
    %222 = math.tanh %221 : vector<2x32xf32>
    %223 = vector.extract_strided_slice %183 {offsets = [0, 96], sizes = [2, 32], strides = [1, 1]} : vector<2x128xf32> to vector<2x32xf32>
    %224 = arith.negf %223 : vector<2x32xf32>
    %225 = math.exp %224 : vector<2x32xf32>
    %cst_40 = arith.constant 1.000000e+00 : f32
    %226 = vector.broadcast %cst_40 : f32 to vector<2x32xf32>
    %227 = arith.addf %226, %225 : vector<2x32xf32>
    %228 = arith.divf %226, %227 : vector<2x32xf32>
    %229 = arith.mulf %220, %173 : vector<2x32xf32>
    %230 = arith.mulf %214, %222 : vector<2x32xf32>
    %231 = arith.addf %229, %230 : vector<2x32xf32>
    %232 = math.tanh %231 : vector<2x32xf32>
    %233 = arith.mulf %228, %232 : vector<2x32xf32>
    %c2_i32 = arith.constant 2 : i32
    %234 = vector.broadcast %c2_i32 : i32 to vector<2x32xi32>
    %235 = vector.broadcast %0 : i32 to vector<2x32xi32>
    %236 = arith.cmpi slt, %234, %235 : vector<2x32xi32>
    %c5_i32 = arith.constant 5 : i32
    %237 = vector.broadcast %c5_i32 : i32 to vector<2x32xi32>
    %238 = vector.broadcast %0 : i32 to vector<2x32xi32>
    %239 = arith.cmpi slt, %237, %238 : vector<2x32xi32>
    %240 = arith.select %236, %208, %170 : vector<2x32xi1>, vector<2x32xf32>
    %241 = arith.select %236, %206, %171 : vector<2x32xi1>, vector<2x32xf32>
    %242 = arith.select %239, %233, %172 : vector<2x32xi1>, vector<2x32xf32>
    %243 = arith.select %239, %231, %173 : vector<2x32xi1>, vector<2x32xf32>
    %244 = vector.extract_strided_slice %18 {offsets = [3, 0, 0], sizes = [1, 2, 128], strides = [1, 1, 1]} : vector<8x2x128xf32> to vector<1x2x128xf32>
    %245 = vector.shape_cast %244 : vector<1x2x128xf32> to vector<2x128xf32>
    %246 = arith.truncf %240 : vector<2x32xf32> to vector<2x32xbf16>
    %cst_41 = arith.constant dense<0.000000e+00> : vector<2x128xf32>
    %247 = tpu.matmul %246, %30, %cst_41 {dimension_numbers = #tpu.dot_dimension_numbers<[1], [0], [0], [1], [0, 0, 1, 1], [], []>} : vector<2x32xbf16>, vector<32x128xbf16>, vector<2x128xf32> -> vector<2x128xf32>
    %248 = arith.addf %245, %247 : vector<2x128xf32>
    %249 = vector.extract_strided_slice %28 {offsets = [4, 0, 0], sizes = [1, 2, 128], strides = [1, 1, 1]} : vector<8x2x128xf32> to vector<1x2x128xf32>
    %250 = vector.shape_cast %249 : vector<1x2x128xf32> to vector<2x128xf32>
    %251 = arith.truncf %242 : vector<2x32xf32> to vector<2x32xbf16>
    %cst_42 = arith.constant dense<0.000000e+00> : vector<2x128xf32>
    %252 = tpu.matmul %251, %32, %cst_42 {dimension_numbers = #tpu.dot_dimension_numbers<[1], [0], [0], [1], [0, 0, 1, 1], [], []>} : vector<2x32xbf16>, vector<32x128xbf16>, vector<2x128xf32> -> vector<2x128xf32>
    %253 = arith.addf %250, %252 : vector<2x128xf32>
    %254 = vector.extract_strided_slice %248 {offsets = [0, 0], sizes = [2, 32], strides = [1, 1]} : vector<2x128xf32> to vector<2x32xf32>
    %255 = arith.negf %254 : vector<2x32xf32>
    %256 = math.exp %255 : vector<2x32xf32>
    %cst_43 = arith.constant 1.000000e+00 : f32
    %257 = vector.broadcast %cst_43 : f32 to vector<2x32xf32>
    %258 = arith.addf %257, %256 : vector<2x32xf32>
    %259 = arith.divf %257, %258 : vector<2x32xf32>
    %260 = vector.extract_strided_slice %248 {offsets = [0, 32], sizes = [2, 32], strides = [1, 1]} : vector<2x128xf32> to vector<2x32xf32>
    %261 = arith.negf %260 : vector<2x32xf32>
    %262 = math.exp %261 : vector<2x32xf32>
    %cst_44 = arith.constant 1.000000e+00 : f32
    %263 = vector.broadcast %cst_44 : f32 to vector<2x32xf32>
    %264 = arith.addf %263, %262 : vector<2x32xf32>
    %265 = arith.divf %263, %264 : vector<2x32xf32>
    %266 = vector.extract_strided_slice %248 {offsets = [0, 64], sizes = [2, 32], strides = [1, 1]} : vector<2x128xf32> to vector<2x32xf32>
    %267 = math.tanh %266 : vector<2x32xf32>
    %268 = vector.extract_strided_slice %248 {offsets = [0, 96], sizes = [2, 32], strides = [1, 1]} : vector<2x128xf32> to vector<2x32xf32>
    %269 = arith.negf %268 : vector<2x32xf32>
    %270 = math.exp %269 : vector<2x32xf32>
    %cst_45 = arith.constant 1.000000e+00 : f32
    %271 = vector.broadcast %cst_45 : f32 to vector<2x32xf32>
    %272 = arith.addf %271, %270 : vector<2x32xf32>
    %273 = arith.divf %271, %272 : vector<2x32xf32>
    %274 = arith.mulf %265, %241 : vector<2x32xf32>
    %275 = arith.mulf %259, %267 : vector<2x32xf32>
    %276 = arith.addf %274, %275 : vector<2x32xf32>
    %277 = math.tanh %276 : vector<2x32xf32>
    %278 = arith.mulf %273, %277 : vector<2x32xf32>
    %279 = vector.extract_strided_slice %253 {offsets = [0, 0], sizes = [2, 32], strides = [1, 1]} : vector<2x128xf32> to vector<2x32xf32>
    %280 = arith.negf %279 : vector<2x32xf32>
    %281 = math.exp %280 : vector<2x32xf32>
    %cst_46 = arith.constant 1.000000e+00 : f32
    %282 = vector.broadcast %cst_46 : f32 to vector<2x32xf32>
    %283 = arith.addf %282, %281 : vector<2x32xf32>
    %284 = arith.divf %282, %283 : vector<2x32xf32>
    %285 = vector.extract_strided_slice %253 {offsets = [0, 32], sizes = [2, 32], strides = [1, 1]} : vector<2x128xf32> to vector<2x32xf32>
    %286 = arith.negf %285 : vector<2x32xf32>
    %287 = math.exp %286 : vector<2x32xf32>
    %cst_47 = arith.constant 1.000000e+00 : f32
    %288 = vector.broadcast %cst_47 : f32 to vector<2x32xf32>
    %289 = arith.addf %288, %287 : vector<2x32xf32>
    %290 = arith.divf %288, %289 : vector<2x32xf32>
    %291 = vector.extract_strided_slice %253 {offsets = [0, 64], sizes = [2, 32], strides = [1, 1]} : vector<2x128xf32> to vector<2x32xf32>
    %292 = math.tanh %291 : vector<2x32xf32>
    %293 = vector.extract_strided_slice %253 {offsets = [0, 96], sizes = [2, 32], strides = [1, 1]} : vector<2x128xf32> to vector<2x32xf32>
    %294 = arith.negf %293 : vector<2x32xf32>
    %295 = math.exp %294 : vector<2x32xf32>
    %cst_48 = arith.constant 1.000000e+00 : f32
    %296 = vector.broadcast %cst_48 : f32 to vector<2x32xf32>
    %297 = arith.addf %296, %295 : vector<2x32xf32>
    %298 = arith.divf %296, %297 : vector<2x32xf32>
    %299 = arith.mulf %290, %243 : vector<2x32xf32>
    %300 = arith.mulf %284, %292 : vector<2x32xf32>
    %301 = arith.addf %299, %300 : vector<2x32xf32>
    %302 = math.tanh %301 : vector<2x32xf32>
    %303 = arith.mulf %298, %302 : vector<2x32xf32>
    %c3_i32 = arith.constant 3 : i32
    %304 = vector.broadcast %c3_i32 : i32 to vector<2x32xi32>
    %305 = vector.broadcast %0 : i32 to vector<2x32xi32>
    %306 = arith.cmpi slt, %304, %305 : vector<2x32xi32>
    %c4_i32 = arith.constant 4 : i32
    %307 = vector.broadcast %c4_i32 : i32 to vector<2x32xi32>
    %308 = vector.broadcast %0 : i32 to vector<2x32xi32>
    %309 = arith.cmpi slt, %307, %308 : vector<2x32xi32>
    %310 = arith.select %306, %278, %240 : vector<2x32xi1>, vector<2x32xf32>
    %311 = arith.select %306, %276, %241 : vector<2x32xi1>, vector<2x32xf32>
    %312 = arith.select %309, %303, %242 : vector<2x32xi1>, vector<2x32xf32>
    %313 = arith.select %309, %301, %243 : vector<2x32xi1>, vector<2x32xf32>
    %314 = vector.extract_strided_slice %18 {offsets = [4, 0, 0], sizes = [1, 2, 128], strides = [1, 1, 1]} : vector<8x2x128xf32> to vector<1x2x128xf32>
    %315 = vector.shape_cast %314 : vector<1x2x128xf32> to vector<2x128xf32>
    %316 = arith.truncf %310 : vector<2x32xf32> to vector<2x32xbf16>
    %cst_49 = arith.constant dense<0.000000e+00> : vector<2x128xf32>
    %317 = tpu.matmul %316, %30, %cst_49 {dimension_numbers = #tpu.dot_dimension_numbers<[1], [0], [0], [1], [0, 0, 1, 1], [], []>} : vector<2x32xbf16>, vector<32x128xbf16>, vector<2x128xf32> -> vector<2x128xf32>
    %318 = arith.addf %315, %317 : vector<2x128xf32>
    %319 = vector.extract_strided_slice %28 {offsets = [3, 0, 0], sizes = [1, 2, 128], strides = [1, 1, 1]} : vector<8x2x128xf32> to vector<1x2x128xf32>
    %320 = vector.shape_cast %319 : vector<1x2x128xf32> to vector<2x128xf32>
    %321 = arith.truncf %312 : vector<2x32xf32> to vector<2x32xbf16>
    %cst_50 = arith.constant dense<0.000000e+00> : vector<2x128xf32>
    %322 = tpu.matmul %321, %32, %cst_50 {dimension_numbers = #tpu.dot_dimension_numbers<[1], [0], [0], [1], [0, 0, 1, 1], [], []>} : vector<2x32xbf16>, vector<32x128xbf16>, vector<2x128xf32> -> vector<2x128xf32>
    %323 = arith.addf %320, %322 : vector<2x128xf32>
    %324 = vector.extract_strided_slice %318 {offsets = [0, 0], sizes = [2, 32], strides = [1, 1]} : vector<2x128xf32> to vector<2x32xf32>
    %325 = arith.negf %324 : vector<2x32xf32>
    %326 = math.exp %325 : vector<2x32xf32>
    %cst_51 = arith.constant 1.000000e+00 : f32
    %327 = vector.broadcast %cst_51 : f32 to vector<2x32xf32>
    %328 = arith.addf %327, %326 : vector<2x32xf32>
    %329 = arith.divf %327, %328 : vector<2x32xf32>
    %330 = vector.extract_strided_slice %318 {offsets = [0, 32], sizes = [2, 32], strides = [1, 1]} : vector<2x128xf32> to vector<2x32xf32>
    %331 = arith.negf %330 : vector<2x32xf32>
    %332 = math.exp %331 : vector<2x32xf32>
    %cst_52 = arith.constant 1.000000e+00 : f32
    %333 = vector.broadcast %cst_52 : f32 to vector<2x32xf32>
    %334 = arith.addf %333, %332 : vector<2x32xf32>
    %335 = arith.divf %333, %334 : vector<2x32xf32>
    %336 = vector.extract_strided_slice %318 {offsets = [0, 64], sizes = [2, 32], strides = [1, 1]} : vector<2x128xf32> to vector<2x32xf32>
    %337 = math.tanh %336 : vector<2x32xf32>
    %338 = vector.extract_strided_slice %318 {offsets = [0, 96], sizes = [2, 32], strides = [1, 1]} : vector<2x128xf32> to vector<2x32xf32>
    %339 = arith.negf %338 : vector<2x32xf32>
    %340 = math.exp %339 : vector<2x32xf32>
    %cst_53 = arith.constant 1.000000e+00 : f32
    %341 = vector.broadcast %cst_53 : f32 to vector<2x32xf32>
    %342 = arith.addf %341, %340 : vector<2x32xf32>
    %343 = arith.divf %341, %342 : vector<2x32xf32>
    %344 = arith.mulf %335, %311 : vector<2x32xf32>
    %345 = arith.mulf %329, %337 : vector<2x32xf32>
    %346 = arith.addf %344, %345 : vector<2x32xf32>
    %347 = math.tanh %346 : vector<2x32xf32>
    %348 = arith.mulf %343, %347 : vector<2x32xf32>
    %349 = vector.extract_strided_slice %323 {offsets = [0, 0], sizes = [2, 32], strides = [1, 1]} : vector<2x128xf32> to vector<2x32xf32>
    %350 = arith.negf %349 : vector<2x32xf32>
    %351 = math.exp %350 : vector<2x32xf32>
    %cst_54 = arith.constant 1.000000e+00 : f32
    %352 = vector.broadcast %cst_54 : f32 to vector<2x32xf32>
    %353 = arith.addf %352, %351 : vector<2x32xf32>
    %354 = arith.divf %352, %353 : vector<2x32xf32>
    %355 = vector.extract_strided_slice %323 {offsets = [0, 32], sizes = [2, 32], strides = [1, 1]} : vector<2x128xf32> to vector<2x32xf32>
    %356 = arith.negf %355 : vector<2x32xf32>
    %357 = math.exp %356 : vector<2x32xf32>
    %cst_55 = arith.constant 1.000000e+00 : f32
    %358 = vector.broadcast %cst_55 : f32 to vector<2x32xf32>
    %359 = arith.addf %358, %357 : vector<2x32xf32>
    %360 = arith.divf %358, %359 : vector<2x32xf32>
    %361 = vector.extract_strided_slice %323 {offsets = [0, 64], sizes = [2, 32], strides = [1, 1]} : vector<2x128xf32> to vector<2x32xf32>
    %362 = math.tanh %361 : vector<2x32xf32>
    %363 = vector.extract_strided_slice %323 {offsets = [0, 96], sizes = [2, 32], strides = [1, 1]} : vector<2x128xf32> to vector<2x32xf32>
    %364 = arith.negf %363 : vector<2x32xf32>
    %365 = math.exp %364 : vector<2x32xf32>
    %cst_56 = arith.constant 1.000000e+00 : f32
    %366 = vector.broadcast %cst_56 : f32 to vector<2x32xf32>
    %367 = arith.addf %366, %365 : vector<2x32xf32>
    %368 = arith.divf %366, %367 : vector<2x32xf32>
    %369 = arith.mulf %360, %313 : vector<2x32xf32>
    %370 = arith.mulf %354, %362 : vector<2x32xf32>
    %371 = arith.addf %369, %370 : vector<2x32xf32>
    %372 = math.tanh %371 : vector<2x32xf32>
    %373 = arith.mulf %368, %372 : vector<2x32xf32>
    %c4_i32_57 = arith.constant 4 : i32
    %374 = vector.broadcast %c4_i32_57 : i32 to vector<2x32xi32>
    %375 = vector.broadcast %0 : i32 to vector<2x32xi32>
    %376 = arith.cmpi slt, %374, %375 : vector<2x32xi32>
    %c3_i32_58 = arith.constant 3 : i32
    %377 = vector.broadcast %c3_i32_58 : i32 to vector<2x32xi32>
    %378 = vector.broadcast %0 : i32 to vector<2x32xi32>
    %379 = arith.cmpi slt, %377, %378 : vector<2x32xi32>
    %380 = arith.select %376, %348, %310 : vector<2x32xi1>, vector<2x32xf32>
    %381 = arith.select %376, %346, %311 : vector<2x32xi1>, vector<2x32xf32>
    %382 = arith.select %379, %373, %312 : vector<2x32xi1>, vector<2x32xf32>
    %383 = arith.select %379, %371, %313 : vector<2x32xi1>, vector<2x32xf32>
    %384 = vector.extract_strided_slice %18 {offsets = [5, 0, 0], sizes = [1, 2, 128], strides = [1, 1, 1]} : vector<8x2x128xf32> to vector<1x2x128xf32>
    %385 = vector.shape_cast %384 : vector<1x2x128xf32> to vector<2x128xf32>
    %386 = arith.truncf %380 : vector<2x32xf32> to vector<2x32xbf16>
    %cst_59 = arith.constant dense<0.000000e+00> : vector<2x128xf32>
    %387 = tpu.matmul %386, %30, %cst_59 {dimension_numbers = #tpu.dot_dimension_numbers<[1], [0], [0], [1], [0, 0, 1, 1], [], []>} : vector<2x32xbf16>, vector<32x128xbf16>, vector<2x128xf32> -> vector<2x128xf32>
    %388 = arith.addf %385, %387 : vector<2x128xf32>
    %389 = vector.extract_strided_slice %28 {offsets = [2, 0, 0], sizes = [1, 2, 128], strides = [1, 1, 1]} : vector<8x2x128xf32> to vector<1x2x128xf32>
    %390 = vector.shape_cast %389 : vector<1x2x128xf32> to vector<2x128xf32>
    %391 = arith.truncf %382 : vector<2x32xf32> to vector<2x32xbf16>
    %cst_60 = arith.constant dense<0.000000e+00> : vector<2x128xf32>
    %392 = tpu.matmul %391, %32, %cst_60 {dimension_numbers = #tpu.dot_dimension_numbers<[1], [0], [0], [1], [0, 0, 1, 1], [], []>} : vector<2x32xbf16>, vector<32x128xbf16>, vector<2x128xf32> -> vector<2x128xf32>
    %393 = arith.addf %390, %392 : vector<2x128xf32>
    %394 = vector.extract_strided_slice %388 {offsets = [0, 0], sizes = [2, 32], strides = [1, 1]} : vector<2x128xf32> to vector<2x32xf32>
    %395 = arith.negf %394 : vector<2x32xf32>
    %396 = math.exp %395 : vector<2x32xf32>
    %cst_61 = arith.constant 1.000000e+00 : f32
    %397 = vector.broadcast %cst_61 : f32 to vector<2x32xf32>
    %398 = arith.addf %397, %396 : vector<2x32xf32>
    %399 = arith.divf %397, %398 : vector<2x32xf32>
    %400 = vector.extract_strided_slice %388 {offsets = [0, 32], sizes = [2, 32], strides = [1, 1]} : vector<2x128xf32> to vector<2x32xf32>
    %401 = arith.negf %400 : vector<2x32xf32>
    %402 = math.exp %401 : vector<2x32xf32>
    %cst_62 = arith.constant 1.000000e+00 : f32
    %403 = vector.broadcast %cst_62 : f32 to vector<2x32xf32>
    %404 = arith.addf %403, %402 : vector<2x32xf32>
    %405 = arith.divf %403, %404 : vector<2x32xf32>
    %406 = vector.extract_strided_slice %388 {offsets = [0, 64], sizes = [2, 32], strides = [1, 1]} : vector<2x128xf32> to vector<2x32xf32>
    %407 = math.tanh %406 : vector<2x32xf32>
    %408 = vector.extract_strided_slice %388 {offsets = [0, 96], sizes = [2, 32], strides = [1, 1]} : vector<2x128xf32> to vector<2x32xf32>
    %409 = arith.negf %408 : vector<2x32xf32>
    %410 = math.exp %409 : vector<2x32xf32>
    %cst_63 = arith.constant 1.000000e+00 : f32
    %411 = vector.broadcast %cst_63 : f32 to vector<2x32xf32>
    %412 = arith.addf %411, %410 : vector<2x32xf32>
    %413 = arith.divf %411, %412 : vector<2x32xf32>
    %414 = arith.mulf %405, %381 : vector<2x32xf32>
    %415 = arith.mulf %399, %407 : vector<2x32xf32>
    %416 = arith.addf %414, %415 : vector<2x32xf32>
    %417 = math.tanh %416 : vector<2x32xf32>
    %418 = arith.mulf %413, %417 : vector<2x32xf32>
    %419 = vector.extract_strided_slice %393 {offsets = [0, 0], sizes = [2, 32], strides = [1, 1]} : vector<2x128xf32> to vector<2x32xf32>
    %420 = arith.negf %419 : vector<2x32xf32>
    %421 = math.exp %420 : vector<2x32xf32>
    %cst_64 = arith.constant 1.000000e+00 : f32
    %422 = vector.broadcast %cst_64 : f32 to vector<2x32xf32>
    %423 = arith.addf %422, %421 : vector<2x32xf32>
    %424 = arith.divf %422, %423 : vector<2x32xf32>
    %425 = vector.extract_strided_slice %393 {offsets = [0, 32], sizes = [2, 32], strides = [1, 1]} : vector<2x128xf32> to vector<2x32xf32>
    %426 = arith.negf %425 : vector<2x32xf32>
    %427 = math.exp %426 : vector<2x32xf32>
    %cst_65 = arith.constant 1.000000e+00 : f32
    %428 = vector.broadcast %cst_65 : f32 to vector<2x32xf32>
    %429 = arith.addf %428, %427 : vector<2x32xf32>
    %430 = arith.divf %428, %429 : vector<2x32xf32>
    %431 = vector.extract_strided_slice %393 {offsets = [0, 64], sizes = [2, 32], strides = [1, 1]} : vector<2x128xf32> to vector<2x32xf32>
    %432 = math.tanh %431 : vector<2x32xf32>
    %433 = vector.extract_strided_slice %393 {offsets = [0, 96], sizes = [2, 32], strides = [1, 1]} : vector<2x128xf32> to vector<2x32xf32>
    %434 = arith.negf %433 : vector<2x32xf32>
    %435 = math.exp %434 : vector<2x32xf32>
    %cst_66 = arith.constant 1.000000e+00 : f32
    %436 = vector.broadcast %cst_66 : f32 to vector<2x32xf32>
    %437 = arith.addf %436, %435 : vector<2x32xf32>
    %438 = arith.divf %436, %437 : vector<2x32xf32>
    %439 = arith.mulf %430, %383 : vector<2x32xf32>
    %440 = arith.mulf %424, %432 : vector<2x32xf32>
    %441 = arith.addf %439, %440 : vector<2x32xf32>
    %442 = math.tanh %441 : vector<2x32xf32>
    %443 = arith.mulf %438, %442 : vector<2x32xf32>
    %c5_i32_67 = arith.constant 5 : i32
    %444 = vector.broadcast %c5_i32_67 : i32 to vector<2x32xi32>
    %445 = vector.broadcast %0 : i32 to vector<2x32xi32>
    %446 = arith.cmpi slt, %444, %445 : vector<2x32xi32>
    %c2_i32_68 = arith.constant 2 : i32
    %447 = vector.broadcast %c2_i32_68 : i32 to vector<2x32xi32>
    %448 = vector.broadcast %0 : i32 to vector<2x32xi32>
    %449 = arith.cmpi slt, %447, %448 : vector<2x32xi32>
    %450 = arith.select %446, %418, %380 : vector<2x32xi1>, vector<2x32xf32>
    %451 = arith.select %446, %416, %381 : vector<2x32xi1>, vector<2x32xf32>
    %452 = arith.select %449, %443, %382 : vector<2x32xi1>, vector<2x32xf32>
    %453 = arith.select %449, %441, %383 : vector<2x32xi1>, vector<2x32xf32>
    %454 = vector.extract_strided_slice %18 {offsets = [6, 0, 0], sizes = [1, 2, 128], strides = [1, 1, 1]} : vector<8x2x128xf32> to vector<1x2x128xf32>
    %455 = vector.shape_cast %454 : vector<1x2x128xf32> to vector<2x128xf32>
    %456 = arith.truncf %450 : vector<2x32xf32> to vector<2x32xbf16>
    %cst_69 = arith.constant dense<0.000000e+00> : vector<2x128xf32>
    %457 = tpu.matmul %456, %30, %cst_69 {dimension_numbers = #tpu.dot_dimension_numbers<[1], [0], [0], [1], [0, 0, 1, 1], [], []>} : vector<2x32xbf16>, vector<32x128xbf16>, vector<2x128xf32> -> vector<2x128xf32>
    %458 = arith.addf %455, %457 : vector<2x128xf32>
    %459 = vector.extract_strided_slice %28 {offsets = [1, 0, 0], sizes = [1, 2, 128], strides = [1, 1, 1]} : vector<8x2x128xf32> to vector<1x2x128xf32>
    %460 = vector.shape_cast %459 : vector<1x2x128xf32> to vector<2x128xf32>
    %461 = arith.truncf %452 : vector<2x32xf32> to vector<2x32xbf16>
    %cst_70 = arith.constant dense<0.000000e+00> : vector<2x128xf32>
    %462 = tpu.matmul %461, %32, %cst_70 {dimension_numbers = #tpu.dot_dimension_numbers<[1], [0], [0], [1], [0, 0, 1, 1], [], []>} : vector<2x32xbf16>, vector<32x128xbf16>, vector<2x128xf32> -> vector<2x128xf32>
    %463 = arith.addf %460, %462 : vector<2x128xf32>
    %464 = vector.extract_strided_slice %458 {offsets = [0, 0], sizes = [2, 32], strides = [1, 1]} : vector<2x128xf32> to vector<2x32xf32>
    %465 = arith.negf %464 : vector<2x32xf32>
    %466 = math.exp %465 : vector<2x32xf32>
    %cst_71 = arith.constant 1.000000e+00 : f32
    %467 = vector.broadcast %cst_71 : f32 to vector<2x32xf32>
    %468 = arith.addf %467, %466 : vector<2x32xf32>
    %469 = arith.divf %467, %468 : vector<2x32xf32>
    %470 = vector.extract_strided_slice %458 {offsets = [0, 32], sizes = [2, 32], strides = [1, 1]} : vector<2x128xf32> to vector<2x32xf32>
    %471 = arith.negf %470 : vector<2x32xf32>
    %472 = math.exp %471 : vector<2x32xf32>
    %cst_72 = arith.constant 1.000000e+00 : f32
    %473 = vector.broadcast %cst_72 : f32 to vector<2x32xf32>
    %474 = arith.addf %473, %472 : vector<2x32xf32>
    %475 = arith.divf %473, %474 : vector<2x32xf32>
    %476 = vector.extract_strided_slice %458 {offsets = [0, 64], sizes = [2, 32], strides = [1, 1]} : vector<2x128xf32> to vector<2x32xf32>
    %477 = math.tanh %476 : vector<2x32xf32>
    %478 = vector.extract_strided_slice %458 {offsets = [0, 96], sizes = [2, 32], strides = [1, 1]} : vector<2x128xf32> to vector<2x32xf32>
    %479 = arith.negf %478 : vector<2x32xf32>
    %480 = math.exp %479 : vector<2x32xf32>
    %cst_73 = arith.constant 1.000000e+00 : f32
    %481 = vector.broadcast %cst_73 : f32 to vector<2x32xf32>
    %482 = arith.addf %481, %480 : vector<2x32xf32>
    %483 = arith.divf %481, %482 : vector<2x32xf32>
    %484 = arith.mulf %475, %451 : vector<2x32xf32>
    %485 = arith.mulf %469, %477 : vector<2x32xf32>
    %486 = arith.addf %484, %485 : vector<2x32xf32>
    %487 = math.tanh %486 : vector<2x32xf32>
    %488 = arith.mulf %483, %487 : vector<2x32xf32>
    %489 = vector.extract_strided_slice %463 {offsets = [0, 0], sizes = [2, 32], strides = [1, 1]} : vector<2x128xf32> to vector<2x32xf32>
    %490 = arith.negf %489 : vector<2x32xf32>
    %491 = math.exp %490 : vector<2x32xf32>
    %cst_74 = arith.constant 1.000000e+00 : f32
    %492 = vector.broadcast %cst_74 : f32 to vector<2x32xf32>
    %493 = arith.addf %492, %491 : vector<2x32xf32>
    %494 = arith.divf %492, %493 : vector<2x32xf32>
    %495 = vector.extract_strided_slice %463 {offsets = [0, 32], sizes = [2, 32], strides = [1, 1]} : vector<2x128xf32> to vector<2x32xf32>
    %496 = arith.negf %495 : vector<2x32xf32>
    %497 = math.exp %496 : vector<2x32xf32>
    %cst_75 = arith.constant 1.000000e+00 : f32
    %498 = vector.broadcast %cst_75 : f32 to vector<2x32xf32>
    %499 = arith.addf %498, %497 : vector<2x32xf32>
    %500 = arith.divf %498, %499 : vector<2x32xf32>
    %501 = vector.extract_strided_slice %463 {offsets = [0, 64], sizes = [2, 32], strides = [1, 1]} : vector<2x128xf32> to vector<2x32xf32>
    %502 = math.tanh %501 : vector<2x32xf32>
    %503 = vector.extract_strided_slice %463 {offsets = [0, 96], sizes = [2, 32], strides = [1, 1]} : vector<2x128xf32> to vector<2x32xf32>
    %504 = arith.negf %503 : vector<2x32xf32>
    %505 = math.exp %504 : vector<2x32xf32>
    %cst_76 = arith.constant 1.000000e+00 : f32
    %506 = vector.broadcast %cst_76 : f32 to vector<2x32xf32>
    %507 = arith.addf %506, %505 : vector<2x32xf32>
    %508 = arith.divf %506, %507 : vector<2x32xf32>
    %509 = arith.mulf %500, %453 : vector<2x32xf32>
    %510 = arith.mulf %494, %502 : vector<2x32xf32>
    %511 = arith.addf %509, %510 : vector<2x32xf32>
    %512 = math.tanh %511 : vector<2x32xf32>
    %513 = arith.mulf %508, %512 : vector<2x32xf32>
    %c6_i32_77 = arith.constant 6 : i32
    %514 = vector.broadcast %c6_i32_77 : i32 to vector<2x32xi32>
    %515 = vector.broadcast %0 : i32 to vector<2x32xi32>
    %516 = arith.cmpi slt, %514, %515 : vector<2x32xi32>
    %c1_i32_78 = arith.constant 1 : i32
    %517 = vector.broadcast %c1_i32_78 : i32 to vector<2x32xi32>
    %518 = vector.broadcast %0 : i32 to vector<2x32xi32>
    %519 = arith.cmpi slt, %517, %518 : vector<2x32xi32>
    %520 = arith.select %516, %488, %450 : vector<2x32xi1>, vector<2x32xf32>
    %521 = arith.select %516, %486, %451 : vector<2x32xi1>, vector<2x32xf32>
    %522 = arith.select %519, %513, %452 : vector<2x32xi1>, vector<2x32xf32>
    %523 = arith.select %519, %511, %453 : vector<2x32xi1>, vector<2x32xf32>
    %524 = vector.extract_strided_slice %18 {offsets = [7, 0, 0], sizes = [1, 2, 128], strides = [1, 1, 1]} : vector<8x2x128xf32> to vector<1x2x128xf32>
    %525 = vector.shape_cast %524 : vector<1x2x128xf32> to vector<2x128xf32>
    %526 = arith.truncf %520 : vector<2x32xf32> to vector<2x32xbf16>
    %cst_79 = arith.constant dense<0.000000e+00> : vector<2x128xf32>
    %527 = tpu.matmul %526, %30, %cst_79 {dimension_numbers = #tpu.dot_dimension_numbers<[1], [0], [0], [1], [0, 0, 1, 1], [], []>} : vector<2x32xbf16>, vector<32x128xbf16>, vector<2x128xf32> -> vector<2x128xf32>
    %528 = arith.addf %525, %527 : vector<2x128xf32>
    %529 = vector.extract_strided_slice %28 {offsets = [0, 0, 0], sizes = [1, 2, 128], strides = [1, 1, 1]} : vector<8x2x128xf32> to vector<1x2x128xf32>
    %530 = vector.shape_cast %529 : vector<1x2x128xf32> to vector<2x128xf32>
    %531 = arith.truncf %522 : vector<2x32xf32> to vector<2x32xbf16>
    %cst_80 = arith.constant dense<0.000000e+00> : vector<2x128xf32>
    %532 = tpu.matmul %531, %32, %cst_80 {dimension_numbers = #tpu.dot_dimension_numbers<[1], [0], [0], [1], [0, 0, 1, 1], [], []>} : vector<2x32xbf16>, vector<32x128xbf16>, vector<2x128xf32> -> vector<2x128xf32>
    %533 = arith.addf %530, %532 : vector<2x128xf32>
    %534 = vector.extract_strided_slice %528 {offsets = [0, 0], sizes = [2, 32], strides = [1, 1]} : vector<2x128xf32> to vector<2x32xf32>
    %535 = arith.negf %534 : vector<2x32xf32>
    %536 = math.exp %535 : vector<2x32xf32>
    %cst_81 = arith.constant 1.000000e+00 : f32
    %537 = vector.broadcast %cst_81 : f32 to vector<2x32xf32>
    %538 = arith.addf %537, %536 : vector<2x32xf32>
    %539 = arith.divf %537, %538 : vector<2x32xf32>
    %540 = vector.extract_strided_slice %528 {offsets = [0, 32], sizes = [2, 32], strides = [1, 1]} : vector<2x128xf32> to vector<2x32xf32>
    %541 = arith.negf %540 : vector<2x32xf32>
    %542 = math.exp %541 : vector<2x32xf32>
    %cst_82 = arith.constant 1.000000e+00 : f32
    %543 = vector.broadcast %cst_82 : f32 to vector<2x32xf32>
    %544 = arith.addf %543, %542 : vector<2x32xf32>
    %545 = arith.divf %543, %544 : vector<2x32xf32>
    %546 = vector.extract_strided_slice %528 {offsets = [0, 64], sizes = [2, 32], strides = [1, 1]} : vector<2x128xf32> to vector<2x32xf32>
    %547 = math.tanh %546 : vector<2x32xf32>
    %548 = vector.extract_strided_slice %528 {offsets = [0, 96], sizes = [2, 32], strides = [1, 1]} : vector<2x128xf32> to vector<2x32xf32>
    %549 = arith.negf %548 : vector<2x32xf32>
    %550 = math.exp %549 : vector<2x32xf32>
    %cst_83 = arith.constant 1.000000e+00 : f32
    %551 = vector.broadcast %cst_83 : f32 to vector<2x32xf32>
    %552 = arith.addf %551, %550 : vector<2x32xf32>
    %553 = arith.divf %551, %552 : vector<2x32xf32>
    %554 = arith.mulf %545, %521 : vector<2x32xf32>
    %555 = arith.mulf %539, %547 : vector<2x32xf32>
    %556 = arith.addf %554, %555 : vector<2x32xf32>
    %557 = math.tanh %556 : vector<2x32xf32>
    %558 = arith.mulf %553, %557 : vector<2x32xf32>
    %559 = vector.extract_strided_slice %533 {offsets = [0, 0], sizes = [2, 32], strides = [1, 1]} : vector<2x128xf32> to vector<2x32xf32>
    %560 = arith.negf %559 : vector<2x32xf32>
    %561 = math.exp %560 : vector<2x32xf32>
    %cst_84 = arith.constant 1.000000e+00 : f32
    %562 = vector.broadcast %cst_84 : f32 to vector<2x32xf32>
    %563 = arith.addf %562, %561 : vector<2x32xf32>
    %564 = arith.divf %562, %563 : vector<2x32xf32>
    %565 = vector.extract_strided_slice %533 {offsets = [0, 32], sizes = [2, 32], strides = [1, 1]} : vector<2x128xf32> to vector<2x32xf32>
    %566 = arith.negf %565 : vector<2x32xf32>
    %567 = math.exp %566 : vector<2x32xf32>
    %cst_85 = arith.constant 1.000000e+00 : f32
    %568 = vector.broadcast %cst_85 : f32 to vector<2x32xf32>
    %569 = arith.addf %568, %567 : vector<2x32xf32>
    %570 = arith.divf %568, %569 : vector<2x32xf32>
    %571 = vector.extract_strided_slice %533 {offsets = [0, 64], sizes = [2, 32], strides = [1, 1]} : vector<2x128xf32> to vector<2x32xf32>
    %572 = math.tanh %571 : vector<2x32xf32>
    %573 = vector.extract_strided_slice %533 {offsets = [0, 96], sizes = [2, 32], strides = [1, 1]} : vector<2x128xf32> to vector<2x32xf32>
    %574 = arith.negf %573 : vector<2x32xf32>
    %575 = math.exp %574 : vector<2x32xf32>
    %cst_86 = arith.constant 1.000000e+00 : f32
    %576 = vector.broadcast %cst_86 : f32 to vector<2x32xf32>
    %577 = arith.addf %576, %575 : vector<2x32xf32>
    %578 = arith.divf %576, %577 : vector<2x32xf32>
    %579 = arith.mulf %570, %523 : vector<2x32xf32>
    %580 = arith.mulf %564, %572 : vector<2x32xf32>
    %581 = arith.addf %579, %580 : vector<2x32xf32>
    %582 = math.tanh %581 : vector<2x32xf32>
    %583 = arith.mulf %578, %582 : vector<2x32xf32>
    %c7_i32_87 = arith.constant 7 : i32
    %584 = vector.broadcast %c7_i32_87 : i32 to vector<2x32xi32>
    %585 = vector.broadcast %0 : i32 to vector<2x32xi32>
    %586 = arith.cmpi slt, %584, %585 : vector<2x32xi32>
    %c0_i32_88 = arith.constant 0 : i32
    %587 = vector.broadcast %c0_i32_88 : i32 to vector<2x32xi32>
    %588 = vector.broadcast %0 : i32 to vector<2x32xi32>
    %589 = arith.cmpi slt, %587, %588 : vector<2x32xi32>
    %590 = arith.select %586, %558, %520 : vector<2x32xi1>, vector<2x32xf32>
    %591 = arith.select %589, %583, %522 : vector<2x32xi1>, vector<2x32xf32>
    %592 = vector.extract_strided_slice %590 {offsets = [0, 0], sizes = [1, 32], strides = [1, 1]} : vector<2x32xf32> to vector<1x32xf32>
    %593 = vector.extract_strided_slice %590 {offsets = [1, 0], sizes = [1, 32], strides = [1, 1]} : vector<2x32xf32> to vector<1x32xf32>
    %594 = vector.extract_strided_slice %591 {offsets = [0, 0], sizes = [1, 32], strides = [1, 1]} : vector<2x32xf32> to vector<1x32xf32>
    %595 = vector.extract_strided_slice %591 {offsets = [1, 0], sizes = [1, 32], strides = [1, 1]} : vector<2x32xf32> to vector<1x32xf32>
    %596 = tpu.concatenate %592, %594 in 0 : vector<1x32xf32>, vector<1x32xf32> -> vector<2x32xf32>
    %cst_89 = arith.constant 0.000000e+00 : f32
    %597 = vector.broadcast %cst_89 : f32 to vector<2x32xf32>
    %598 = arith.maximumf %596, %597 : vector<2x32xf32>
    %599 = tpu.concatenate %593, %595 in 0 : vector<1x32xf32>, vector<1x32xf32> -> vector<2x32xf32>
    %cst_90 = arith.constant 0.000000e+00 : f32
    %600 = vector.broadcast %cst_90 : f32 to vector<2x32xf32>
    %601 = arith.maximumf %599, %600 : vector<2x32xf32>
    %c0_91 = arith.constant 0 : index
    %c0_92 = arith.constant 0 : index
    %602 = vector.load %arg8[%c0_91, %c0_92] : memref<64x32xf32, #tpu.memory_space<vmem>>, vector<64x32xf32>
    %603 = arith.truncf %598 : vector<2x32xf32> to vector<2x32xbf16>
    %604 = vector.extract_strided_slice %602 {offsets = [0, 0], sizes = [32, 32], strides = [1, 1]} : vector<64x32xf32> to vector<32x32xf32>
    %605 = arith.truncf %604 : vector<32x32xf32> to vector<32x32xbf16>
    %cst_93 = arith.constant dense<0.000000e+00> : vector<2x32xf32>
    %606 = tpu.matmul %603, %605, %cst_93 {dimension_numbers = #tpu.dot_dimension_numbers<[1], [0], [0], [1], [0, 0, 1, 1], [], []>} : vector<2x32xbf16>, vector<32x32xbf16>, vector<2x32xf32> -> vector<2x32xf32>
    %607 = arith.truncf %601 : vector<2x32xf32> to vector<2x32xbf16>
    %608 = vector.extract_strided_slice %602 {offsets = [32, 0], sizes = [32, 32], strides = [1, 1]} : vector<64x32xf32> to vector<32x32xf32>
    %609 = arith.truncf %608 : vector<32x32xf32> to vector<32x32xbf16>
    %cst_94 = arith.constant dense<0.000000e+00> : vector<2x32xf32>
    %610 = tpu.matmul %607, %609, %cst_94 {dimension_numbers = #tpu.dot_dimension_numbers<[1], [0], [0], [1], [0, 0, 1, 1], [], []>} : vector<2x32xbf16>, vector<32x32xbf16>, vector<2x32xf32> -> vector<2x32xf32>
    %611 = arith.addf %606, %610 : vector<2x32xf32>
    %c0_95 = arith.constant 0 : index
    %c0_96 = arith.constant 0 : index
    %612 = vector.load %arg9[%c0_95, %c0_96] : memref<1x32xf32, #tpu.memory_space<vmem>>, vector<1x32xf32>
    %613 = vector.broadcast %612 : vector<1x32xf32> to vector<2x32xf32>
    %614 = arith.addf %611, %613 : vector<2x32xf32>
    %c0_97 = arith.constant 0 : index
    %c0_98 = arith.constant 0 : index
    %615 = vector.load %arg10[%c0_97, %c0_98] : memref<2x32xf32, #tpu.memory_space<vmem>>, vector<2x32xf32>
    tpu.vector_store %arg10[%c0_97, %c0_98], %614 {strides = array<i32>} : memref<2x32xf32, #tpu.memory_space<vmem>>, vector<2x32xf32>,
    return
  }
}

</mosaic_0001>

<llo_original>
// kernel: tpu_custom_call.1
$region0: #{tpu_custom_call.1}
  #allocation0 [shape = 'u32[]', space=smem, size = 0x4, offset = 0x4, fixed_abs, tag = 'smem constant byte address 0x4 - core index']
  #allocation1 [shape = 'u32[72,128]{1,0:T(1,128)}', space=vmem, size = 0x9000, scoped, tag = 'internal scratch']
  #allocation2 [shape = 's32[1]{0:T(128)S(6)}', space=smem, size = 0x200, scoped, tag = 'scoped memory for tpu_custom_call.1']
  %s0 = inlined_call_operand.<no memory space> [shape: s32[1], index: 0, kind: input, shape index: {}]
  %s1 = inlined_call_operand.vmem [shape: f32[8,2], index: 1, kind: input, shape index: {}]
  %s2 = inlined_call_operand.vmem [shape: f32[1,128], index: 2, kind: input, shape index: {}]
  %s3 = inlined_call_operand.vmem [shape: f32[32,128], index: 3, kind: input, shape index: {}]
  %s4 = inlined_call_operand.vmem [shape: f32[1,128], index: 4, kind: input, shape index: {}]
  %s5 = inlined_call_operand.vmem [shape: f32[1,128], index: 5, kind: input, shape index: {}]
  %s6 = inlined_call_operand.vmem [shape: f32[32,128], index: 6, kind: input, shape index: {}]
  %s7 = inlined_call_operand.vmem [shape: f32[1,128], index: 7, kind: input, shape index: {}]
  %s8 = inlined_call_operand.vmem [shape: f32[64,32], index: 8, kind: input, shape index: {}]
  %s9 = inlined_call_operand.vmem [shape: f32[1,32], index: 9, kind: input, shape index: {}]
  %s10 = inlined_call_operand.hbm [shape: f32[2,32], index: 10, kind: output, shape index: {}]
  %s11 = sld [smem:[#allocation0]]
  $region50: #{tpu_custom_call.1} parent=0
    _
  %s13 = ssub.s32 1, %s11
  %s14 = scalar_select 0, %s13, %s11
  %15 = sst [smem:[#allocation2]] %s0
  $region1: #{tpu_custom_call.1} parent=0
    #allocation3 [shape = 'u8[1024]{0}', space=vmem, size = 0x400, scoped, tag = 'output window, operand 0, single buffered']
    #allocation4 [shape = 's32[1]{0}', space=sflag, size = 0x4, scoped, tag = 'scoped memory for tpu_custom_call.1']
    %16 = vsyncpa [#allocation4], 0
    // Predicated region
    $region2: #{tpu_custom_call.1} parent=1 // pred_check
      _
    $region3: #{tpu_custom_call.1} parent=1 // pred_check_branch
      %18 = sbr.rel (0) target = $region5
    $region4: #{tpu_custom_call.1} parent=1 // pred_region
      _
    $region5: #{tpu_custom_call.1} parent=1 // pred_fallthru
      _
    // Predicated region
    $region6: #{tpu_custom_call.1} parent=1 // pred_check
      _
    $region7: #{tpu_custom_call.1} parent=1 // pred_check_branch
      %20 = sbr.rel (0) target = $region9
    $region8: #{tpu_custom_call.1} parent=1 // pred_region
      _
    $region9: #{tpu_custom_call.1} parent=1 // pred_fallthru
      _
    // Predicated region
    $region10: #{tpu_custom_call.1} parent=1 // pred_check
      _
    $region11: #{tpu_custom_call.1} parent=1 // pred_check_branch
      %22 = sbr.rel (0) target = $region13
    $region12: #{tpu_custom_call.1} parent=1 // pred_region
      _
    $region13: #{tpu_custom_call.1} parent=1 // pred_fallthru
      _
    // Predicated region
    $region14: #{tpu_custom_call.1} parent=1 // pred_check
      _
    $region15: #{tpu_custom_call.1} parent=1 // pred_check_branch
      %24 = sbr.rel (0) target = $region17
    $region16: #{tpu_custom_call.1} parent=1 // pred_region
      _
    $region17: #{tpu_custom_call.1} parent=1 // pred_fallthru
      _
    // Predicated region
    $region18: #{tpu_custom_call.1} parent=1 // pred_check
      _
    $region19: #{tpu_custom_call.1} parent=1 // pred_check_branch
      %26 = sbr.rel (0) target = $region21
    $region20: #{tpu_custom_call.1} parent=1 // pred_region
      _
    $region21: #{tpu_custom_call.1} parent=1 // pred_fallthru
      _
    // Predicated region
    $region22: #{tpu_custom_call.1} parent=1 // pred_check
      _
    $region23: #{tpu_custom_call.1} parent=1 // pred_check_branch
      %28 = sbr.rel (0) target = $region25
    $region24: #{tpu_custom_call.1} parent=1 // pred_region
      _
    $region25: #{tpu_custom_call.1} parent=1 // pred_fallthru
      _
    // Predicated region
    $region26: #{tpu_custom_call.1} parent=1 // pred_check
      _
    $region27: #{tpu_custom_call.1} parent=1 // pred_check_branch
      %30 = sbr.rel (0) target = $region29
    $region28: #{tpu_custom_call.1} parent=1 // pred_region
      _
    $region29: #{tpu_custom_call.1} parent=1 // pred_fallthru
      _
    // Predicated region
    $region30: #{tpu_custom_call.1} parent=1 // pred_check
      _
    $region31: #{tpu_custom_call.1} parent=1 // pred_check_branch
      %32 = sbr.rel (0) target = $region33
    $region32: #{tpu_custom_call.1} parent=1 // pred_region
      _
    $region33: #{tpu_custom_call.1} parent=1 // pred_fallthru
      _
    // Predicated region
    $region34: #{tpu_custom_call.1} parent=1 // pred_check
      _
    $region35: #{tpu_custom_call.1} parent=1 // pred_check_branch
      %34 = sbr.rel (0) target = $region37
    $region36: #{tpu_custom_call.1} parent=1 // pred_region
      _
    $region37: #{tpu_custom_call.1} parent=1 // pred_fallthru
      _
    // Predicated region
    $region38: #{tpu_custom_call.1} parent=1 // pred_check
      _
    $region39: #{tpu_custom_call.1} parent=1 // pred_check_branch
      %36 = sbr.rel (0) target = $region41
    $region40: #{tpu_custom_call.1} parent=1 // pred_region
      _
    $region41: #{tpu_custom_call.1} parent=1 // pred_fallthru
      _
    %s38 = sld [smem:[#allocation2]]
    %v39 = vld [vmem:[%s1] sm:$0xff]
    %vm40 = vcmp.ne.f32.partialorder %v39, %v39
    %v41 = vsel %vm40, 0.0, %v39
    %v42 = vmax.f32 %v41, -3.4028235e+38
    %v43 = vmin.f32 %v42, 3.4028235e+38
    %v44 = vperm.slane %v43, 0
    %v45 = vlaneseq
    %v46 = vshrl.u32 %v45, 7
    %48 = vset.pattern.permute.xlu0 %v46
    %49 = vperm.xlu0 %48, %v44
    %v50 = vpop.permute.xlu0 %49
    %v51 = vperm.slane %v43, 1
    %v52 = vlaneseq
    %v53 = vshrl.u32 %v52, 7
    %55 = vset.pattern.permute.xlu0 %v53
    %56 = vperm.xlu0 %55, %v51
    %v57 = vpop.permute.xlu0 %56
    %v58 = vperm.slane %v43, 2
    %v59 = vlaneseq
    %v60 = vshrl.u32 %v59, 7
    %62 = vset.pattern.permute.xlu0 %v60
    %63 = vperm.xlu0 %62, %v58
    %v64 = vpop.permute.xlu0 %63
    %v65 = vperm.slane %v43, 3
    %v66 = vlaneseq
    %v67 = vshrl.u32 %v66, 7
    %69 = vset.pattern.permute.xlu0 %v67
    %70 = vperm.xlu0 %69, %v65
    %v71 = vpop.permute.xlu0 %70
    %v72 = vperm.slane %v43, 4
    %v73 = vlaneseq
    %v74 = vshrl.u32 %v73, 7
    %76 = vset.pattern.permute.xlu0 %v74
    %77 = vperm.xlu0 %76, %v72
    %v78 = vpop.permute.xlu0 %77
    %v79 = vperm.slane %v43, 5
    %v80 = vlaneseq
    %v81 = vshrl.u32 %v80, 7
    %83 = vset.pattern.permute.xlu0 %v81
    %84 = vperm.xlu0 %83, %v79
    %v85 = vpop.permute.xlu0 %84
    %v86 = vperm.slane %v43, 6
    %v87 = vlaneseq
    %v88 = vshrl.u32 %v87, 7
    %90 = vset.pattern.permute.xlu0 %v88
    %91 = vperm.xlu0 %90, %v86
    %v92 = vpop.permute.xlu0 %91
    %v93 = vperm.slane %v43, 7
    %v94 = vlaneseq
    %v95 = vshrl.u32 %v94, 7
    %97 = vset.pattern.permute.xlu0 %v95
    %98 = vperm.xlu0 %97, %v93
    %v99 = vpop.permute.xlu0 %98
    %v100 = vld [vmem:[%s2] sm:$0x1]
    %v102 = vperm.slane %v100, 0
    %v104 = vmul.f32 %v50, %v102
    %v105 = vmul.f32 %v57, %v102
    %v106 = vmul.f32 %v64, %v102
    %v107 = vmul.f32 %v71, %v102
    %v108 = vmul.f32 %v78, %v102
    %v109 = vmul.f32 %v85, %v102
    %v110 = vmul.f32 %v92, %v102
    %v111 = vmul.f32 %v99, %v102
    %v112 = vld [vmem:[%s4] sm:$0x1]
    %v114 = vperm.slane %v112, 0
    %v116 = vadd.f32 %v104, %v114
    %v117 = vadd.f32 %v105, %v114
    %v118 = vadd.f32 %v106, %v114
    %v119 = vadd.f32 %v107, %v114
    %v120 = vadd.f32 %v108, %v114
    %v121 = vadd.f32 %v109, %v114
    %v122 = vadd.f32 %v110, %v114
    %v123 = vadd.f32 %v111, %v114
    %v124 = vld [vmem:[%s5] sm:$0x1]
    %v126 = vperm.slane %v124, 0
    %v128 = vmul.f32 %v50, %v126
    %v129 = vmul.f32 %v57, %v126
    %v130 = vmul.f32 %v64, %v126
    %v131 = vmul.f32 %v71, %v126
    %v132 = vmul.f32 %v78, %v126
    %v133 = vmul.f32 %v85, %v126
    %v134 = vmul.f32 %v92, %v126
    %v135 = vmul.f32 %v99, %v126
    %v136 = vld [vmem:[%s7] sm:$0x1]
    %v138 = vperm.slane %v136, 0
    %v140 = vadd.f32 %v128, %v138
    %v141 = vadd.f32 %v129, %v138
    %v142 = vadd.f32 %v130, %v138
    %v143 = vadd.f32 %v131, %v138
    %v144 = vadd.f32 %v132, %v138
    %v145 = vadd.f32 %v133, %v138
    %v146 = vadd.f32 %v134, %v138
    %v147 = vadd.f32 %v135, %v138
    %v148 = vld [vmem:[%s3] sm:$0xff]
    %v149 = vld [vmem:[%s3 + $0x8] sm:$0xff]
    %v150 = vld [vmem:[%s3 + $0x10] sm:$0xff]
    %v151 = vld [vmem:[%s3 + $0x18] sm:$0xff]
    %v152 = vpack.c.bf16 %v149, %v148
    %v153 = vpack.c.bf16 %v151, %v150
    %v154 = vld [vmem:[%s6] sm:$0xff]
    %v155 = vld [vmem:[%s6 + $0x8] sm:$0xff]
    %v156 = vld [vmem:[%s6 + $0x10] sm:$0xff]
    %v157 = vld [vmem:[%s6 + $0x18] sm:$0xff]
    %v158 = vpack.c.bf16 %v155, %v154
    %v159 = vpack.c.bf16 %v157, %v156
    %vm160 = vcmask 261120
    %v162 = vsel %vm160, 0, 0
    %164 = vmatpush.bf16.msra.mxu0 0
    %165 = vmatpush.bf16.msra.mxu0 0
    %166 = vmatpush.bf16.msra.mxu0 0
    %167 = vmatpush.bf16.msra.mxu0 0
    %168 = vmatpush.bf16.msra.mxu0 0
    %169 = vmatpush.bf16.msra.mxu0 0
    %170 = vmatpush.bf16.msra.mxu0 %v153
    %171 = vmatpush.bf16.msra.mxu0 %v152
    %172 = vmatmul.bf16.gmra.mxu0 %v162
    %v173 = vpop.f32.mrf.mxu0
    %v174 = vadd.f32 0.0, %v173
    %v175 = vpop.f32.mrf.mxu0
    %176 = vdwg.mxu0
    %v177 = vadd.f32 %v116, %v174
    %178 = vmatpush.bf16.msra.mxu0 0
    %179 = vmatpush.bf16.msra.mxu0 0
    %180 = vmatpush.bf16.msra.mxu0 0
    %181 = vmatpush.bf16.msra.mxu0 0
    %182 = vmatpush.bf16.msra.mxu0 0
    %183 = vmatpush.bf16.msra.mxu0 0
    %184 = vmatpush.bf16.msra.mxu0 %v159
    %185 = vmatpush.bf16.msra.mxu0 %v158
    %186 = vmatmul.bf16.gmra.mxu0 %v162
    %v187 = vpop.f32.mrf.mxu0
    %v188 = vadd.f32 0.0, %v187
    %v189 = vpop.f32.mrf.mxu0
    %190 = vdwg.mxu0
    %v191 = vadd.f32 %v147, %v188
    %v192 = vxor.u32 %v177, 2147483648
    %v193 = vmul.f32 %v192, 1.442695
    %v194 = vpow.pop %v193
    %v195 = vadd.f32 %v194, 1.0
    %v196 = vrcp.pop %v195
    %v197 = vmul.f32 %v195, %v196
    %v198 = vsub.f32 1.0, %v197
    %v199 = vmul.f32 %v196, %v198
    %v200 = vadd.f32 %v196, %v199
    %vm201 = vweird.f32 %v195
    %vm202 = vweird.f32 %v196
    %vm203 = vmor %vm201, %vm202
    %v204 = vsel %vm203, %v196, %v200
    %v205 = vand.u32 2147483647, %v195
    %vm206 = vcmp.eq.f32.partialorder %v205, 8.507059e+37
    %v207 = vand.u32 %v195, 2147483648
    %v208 = vor.u32 1.1754944e-38, %v207
    %v209 = vsel %vm206, %v208, %v204
    %v210 = vmul.f32 1.0, %v209
    %v211 = vtanh.pop %v177
    %v212 = vmul.f32 %v210, 0.0
    %214 = vrot.lane.b32.xlu0 %v211, 64
    %v215 = vpop.permute.xlu0 %214
    %v217 = vmul.f32 %v210, %v215
    %219 = vrot.lane.b32.xlu0 %v217, 32
    %v220 = vpop.permute.xlu0 %219
    %v222 = vadd.f32 %v212, %v220
    %v223 = vtanh.pop %v222
    %225 = vrot.lane.b32.xlu0 %v223, 64
    %v226 = vpop.permute.xlu0 %225
    %v228 = vmul.f32 %v210, %v226
    %v229 = vxor.u32 %v191, 2147483648
    %v230 = vmul.f32 %v229, 1.442695
    %v231 = vpow.pop %v230
    %v232 = vadd.f32 %v231, 1.0
    %v233 = vrcp.pop %v232
    %v234 = vmul.f32 %v232, %v233
    %v235 = vsub.f32 1.0, %v234
    %v236 = vmul.f32 %v233, %v235
    %v237 = vadd.f32 %v233, %v236
    %vm238 = vweird.f32 %v232
    %vm239 = vweird.f32 %v233
    %vm240 = vmor %vm238, %vm239
    %v241 = vsel %vm240, %v233, %v237
    %v242 = vand.u32 2147483647, %v232
    %vm243 = vcmp.eq.f32.partialorder %v242, 8.507059e+37
    %v244 = vand.u32 %v232, 2147483648
    %v245 = vor.u32 1.1754944e-38, %v244
    %v246 = vsel %vm243, %v245, %v241
    %v247 = vmul.f32 1.0, %v246
    %v248 = vtanh.pop %v191
    %v249 = vmul.f32 %v247, 0.0
    %251 = vrot.lane.b32.xlu0 %v248, 64
    %v252 = vpop.permute.xlu0 %251
    %v254 = vmul.f32 %v247, %v252
    %256 = vrot.lane.b32.xlu0 %v254, 32
    %v257 = vpop.permute.xlu0 %256
    %v259 = vadd.f32 %v249, %v257
    %v260 = vtanh.pop %v259
    %262 = vrot.lane.b32.xlu0 %v260, 64
    %v263 = vpop.permute.xlu0 %262
    %v265 = vmul.f32 %v247, %v263
    %v266 = vstv %s38
    %vm267 = vcmp.gt.s32.totalorder %v266, 0
    %vm268 = vcmp.gt.s32.totalorder %v266, 7
    %v269 = vsel %vm267, %v228, 0.0
    %v270 = vsel %vm267, %v222, 0.0
    %v271 = vsel %vm268, %v265, 0.0
    %v272 = vsel %vm268, %v259, 0.0
    %v273 = vpack.c.bf16 %v269, %v269
    %275 = vrot.lane.b32.xlu0 %v273, 32
    %v276 = vpop.permute.xlu0 %275
    %v278 = vsel %vm160, %v276, 0
    %280 = vmatpush.bf16.msra.mxu0 0
    %281 = vmatpush.bf16.msra.mxu0 0
    %282 = vmatpush.bf16.msra.mxu0 0
    %283 = vmatpush.bf16.msra.mxu0 0
    %284 = vmatpush.bf16.msra.mxu0 0
    %285 = vmatpush.bf16.msra.mxu0 0
    %286 = vmatpush.bf16.msra.mxu0 %v153
    %287 = vmatpush.bf16.msra.mxu0 %v152
    %288 = vmatmul.bf16.gmra.mxu0 %v278
    %v289 = vpop.f32.mrf.mxu0
    %v290 = vadd.f32 0.0, %v289
    %v291 = vpop.f32.mrf.mxu0
    %292 = vdwg.mxu0
    %v293 = vadd.f32 %v117, %v290
    %v294 = vpack.c.bf16 %v271, %v271
    %296 = vrot.lane.b32.xlu0 %v294, 32
    %v297 = vpop.permute.xlu0 %296
    %v299 = vsel %vm160, %v297, 0
    %301 = vmatpush.bf16.msra.mxu0 0
    %302 = vmatpush.bf16.msra.mxu0 0
    %303 = vmatpush.bf16.msra.mxu0 0
    %304 = vmatpush.bf16.msra.mxu0 0
    %305 = vmatpush.bf16.msra.mxu0 0
    %306 = vmatpush.bf16.msra.mxu0 0
    %307 = vmatpush.bf16.msra.mxu0 %v159
    %308 = vmatpush.bf16.msra.mxu0 %v158
    %309 = vmatmul.bf16.gmra.mxu0 %v299
    %v310 = vpop.f32.mrf.mxu0
    %v311 = vadd.f32 0.0, %v310
    %v312 = vpop.f32.mrf.mxu0
    %313 = vdwg.mxu0
    %v314 = vadd.f32 %v146, %v311
    %v315 = vxor.u32 %v293, 2147483648
    %v316 = vmul.f32 %v315, 1.442695
    %v317 = vpow.pop %v316
    %v318 = vadd.f32 %v317, 1.0
    %v319 = vrcp.pop %v318
    %v320 = vmul.f32 %v318, %v319
    %v321 = vsub.f32 1.0, %v320
    %v322 = vmul.f32 %v319, %v321
    %v323 = vadd.f32 %v319, %v322
    %vm324 = vweird.f32 %v318
    %vm325 = vweird.f32 %v319
    %vm326 = vmor %vm324, %vm325
    %v327 = vsel %vm326, %v319, %v323
    %v328 = vand.u32 2147483647, %v318
    %vm329 = vcmp.eq.f32.partialorder %v328, 8.507059e+37
    %v330 = vand.u32 %v318, 2147483648
    %v331 = vor.u32 1.1754944e-38, %v330
    %v332 = vsel %vm329, %v331, %v327
    %v333 = vmul.f32 1.0, %v332
    %v334 = vtanh.pop %v293
    %v335 = vmul.f32 %v333, %v270
    %337 = vrot.lane.b32.xlu0 %v334, 64
    %v338 = vpop.permute.xlu0 %337
    %v340 = vmul.f32 %v333, %v338
    %342 = vrot.lane.b32.xlu0 %v340, 32
    %v343 = vpop.permute.xlu0 %342
    %v345 = vadd.f32 %v335, %v343
    %v346 = vtanh.pop %v345
    %348 = vrot.lane.b32.xlu0 %v346, 64
    %v349 = vpop.permute.xlu0 %348
    %v351 = vmul.f32 %v333, %v349
    %v352 = vxor.u32 %v314, 2147483648
    %v353 = vmul.f32 %v352, 1.442695
    %v354 = vpow.pop %v353
    %v355 = vadd.f32 %v354, 1.0
    %v356 = vrcp.pop %v355
    %v357 = vmul.f32 %v355, %v356
    %v358 = vsub.f32 1.0, %v357
    %v359 = vmul.f32 %v356, %v358
    %v360 = vadd.f32 %v356, %v359
    %vm361 = vweird.f32 %v355
    %vm362 = vweird.f32 %v356
    %vm363 = vmor %vm361, %vm362
    %v364 = vsel %vm363, %v356, %v360
    %v365 = vand.u32 2147483647, %v355
    %vm366 = vcmp.eq.f32.partialorder %v365, 8.507059e+37
    %v367 = vand.u32 %v355, 2147483648
    %v368 = vor.u32 1.1754944e-38, %v367
    %v369 = vsel %vm366, %v368, %v364
    %v370 = vmul.f32 1.0, %v369
    %v371 = vtanh.pop %v314
    %v372 = vmul.f32 %v370, %v272
    %374 = vrot.lane.b32.xlu0 %v371, 64
    %v375 = vpop.permute.xlu0 %374
    %v377 = vmul.f32 %v370, %v375
    %379 = vrot.lane.b32.xlu0 %v377, 32
    %v380 = vpop.permute.xlu0 %379
    %v382 = vadd.f32 %v372, %v380
    %v383 = vtanh.pop %v382
    %385 = vrot.lane.b32.xlu0 %v383, 64
    %v386 = vpop.permute.xlu0 %385
    %v388 = vmul.f32 %v370, %v386
    %vm389 = vcmp.gt.s32.totalorder %v266, 1
    %vm390 = vcmp.gt.s32.totalorder %v266, 6
    %v391 = vsel %vm389, %v351, %v269
    %v392 = vsel %vm389, %v345, %v270
    %v393 = vsel %vm390, %v388, %v271
    %v394 = vsel %vm390, %v382, %v272
    %v395 = vpack.c.bf16 %v391, %v391
    %397 = vrot.lane.b32.xlu0 %v395, 32
    %v398 = vpop.permute.xlu0 %397
    %v400 = vsel %vm160, %v398, 0
    %402 = vmatpush.bf16.msra.mxu0 0
    %403 = vmatpush.bf16.msra.mxu0 0
    %404 = vmatpush.bf16.msra.mxu0 0
    %405 = vmatpush.bf16.msra.mxu0 0
    %406 = vmatpush.bf16.msra.mxu0 0
    %407 = vmatpush.bf16.msra.mxu0 0
    %408 = vmatpush.bf16.msra.mxu0 %v153
    %409 = vmatpush.bf16.msra.mxu0 %v152
    %410 = vmatmul.bf16.gmra.mxu0 %v400
    %v411 = vpop.f32.mrf.mxu0
    %v412 = vadd.f32 0.0, %v411
    %v413 = vpop.f32.mrf.mxu0
    %414 = vdwg.mxu0
    %v415 = vadd.f32 %v118, %v412
    %v416 = vpack.c.bf16 %v393, %v393
    %418 = vrot.lane.b32.xlu0 %v416, 32
    %v419 = vpop.permute.xlu0 %418
    %v421 = vsel %vm160, %v419, 0
    %423 = vmatpush.bf16.msra.mxu0 0
    %424 = vmatpush.bf16.msra.mxu0 0
    %425 = vmatpush.bf16.msra.mxu0 0
    %426 = vmatpush.bf16.msra.mxu0 0
    %427 = vmatpush.bf16.msra.mxu0 0
    %428 = vmatpush.bf16.msra.mxu0 0
    %429 = vmatpush.bf16.msra.mxu0 %v159
    %430 = vmatpush.bf16.msra.mxu0 %v158
    %431 = vmatmul.bf16.gmra.mxu0 %v421
    %v432 = vpop.f32.mrf.mxu0
    %v433 = vadd.f32 0.0, %v432
    %v434 = vpop.f32.mrf.mxu0
    %435 = vdwg.mxu0
    %v436 = vadd.f32 %v145, %v433
    %v437 = vxor.u32 %v415, 2147483648
    %v438 = vmul.f32 %v437, 1.442695
    %v439 = vpow.pop %v438
    %v440 = vadd.f32 %v439, 1.0
    %v441 = vrcp.pop %v440
    %v442 = vmul.f32 %v440, %v441
    %v443 = vsub.f32 1.0, %v442
    %v444 = vmul.f32 %v441, %v443
    %v445 = vadd.f32 %v441, %v444
    %vm446 = vweird.f32 %v440
    %vm447 = vweird.f32 %v441
    %vm448 = vmor %vm446, %vm447
    %v449 = vsel %vm448, %v441, %v445
    %v450 = vand.u32 2147483647, %v440
    %vm451 = vcmp.eq.f32.partialorder %v450, 8.507059e+37
    %v452 = vand.u32 %v440, 2147483648
    %v453 = vor.u32 1.1754944e-38, %v452
    %v454 = vsel %vm451, %v453, %v449
    %v455 = vmul.f32 1.0, %v454
    %v456 = vtanh.pop %v415
    %v457 = vmul.f32 %v455, %v392
    %459 = vrot.lane.b32.xlu0 %v456, 64
    %v460 = vpop.permute.xlu0 %459
    %v462 = vmul.f32 %v455, %v460
    %464 = vrot.lane.b32.xlu0 %v462, 32
    %v465 = vpop.permute.xlu0 %464
    %v467 = vadd.f32 %v457, %v465
    %v468 = vtanh.pop %v467
    %470 = vrot.lane.b32.xlu0 %v468, 64
    %v471 = vpop.permute.xlu0 %470
    %v473 = vmul.f32 %v455, %v471
    %v474 = vxor.u32 %v436, 2147483648
    %v475 = vmul.f32 %v474, 1.442695
    %v476 = vpow.pop %v475
    %v477 = vadd.f32 %v476, 1.0
    %v478 = vrcp.pop %v477
    %v479 = vmul.f32 %v477, %v478
    %v480 = vsub.f32 1.0, %v479
    %v481 = vmul.f32 %v478, %v480
    %v482 = vadd.f32 %v478, %v481
    %vm483 = vweird.f32 %v477
    %vm484 = vweird.f32 %v478
    %vm485 = vmor %vm483, %vm484
    %v486 = vsel %vm485, %v478, %v482
    %v487 = vand.u32 2147483647, %v477
    %vm488 = vcmp.eq.f32.partialorder %v487, 8.507059e+37
    %v489 = vand.u32 %v477, 2147483648
    %v490 = vor.u32 1.1754944e-38, %v489
    %v491 = vsel %vm488, %v490, %v486
    %v492 = vmul.f32 1.0, %v491
    %v493 = vtanh.pop %v436
    %v494 = vmul.f32 %v492, %v394
    %496 = vrot.lane.b32.xlu0 %v493, 64
    %v497 = vpop.permute.xlu0 %496
    %v499 = vmul.f32 %v492, %v497
    %501 = vrot.lane.b32.xlu0 %v499, 32
    %v502 = vpop.permute.xlu0 %501
    %v504 = vadd.f32 %v494, %v502
    %v505 = vtanh.pop %v504
    %507 = vrot.lane.b32.xlu0 %v505, 64
    %v508 = vpop.permute.xlu0 %507
    %v510 = vmul.f32 %v492, %v508
    %vm511 = vcmp.gt.s32.totalorder %v266, 2
    %vm512 = vcmp.gt.s32.totalorder %v266, 5
    %v513 = vsel %vm511, %v473, %v391
    %v514 = vsel %vm511, %v467, %v392
    %v515 = vsel %vm512, %v510, %v393
    %v516 = vsel %vm512, %v504, %v394
    %v517 = vpack.c.bf16 %v513, %v513
    %519 = vrot.lane.b32.xlu0 %v517, 32
    %v520 = vpop.permute.xlu0 %519
    %v522 = vsel %vm160, %v520, 0
    %524 = vmatpush.bf16.msra.mxu0 0
    %525 = vmatpush.bf16.msra.mxu0 0
    %526 = vmatpush.bf16.msra.mxu0 0
    %527 = vmatpush.bf16.msra.mxu0 0
    %528 = vmatpush.bf16.msra.mxu0 0
    %529 = vmatpush.bf16.msra.mxu0 0
    %530 = vmatpush.bf16.msra.mxu0 %v153
    %531 = vmatpush.bf16.msra.mxu0 %v152
    %532 = vmatmul.bf16.gmra.mxu0 %v522
    %v533 = vpop.f32.mrf.mxu0
    %v534 = vadd.f32 0.0, %v533
    %v535 = vpop.f32.mrf.mxu0
    %536 = vdwg.mxu0
    %v537 = vadd.f32 %v119, %v534
    %v538 = vpack.c.bf16 %v515, %v515
    %540 = vrot.lane.b32.xlu0 %v538, 32
    %v541 = vpop.permute.xlu0 %540
    %v543 = vsel %vm160, %v541, 0
    %545 = vmatpush.bf16.msra.mxu0 0
    %546 = vmatpush.bf16.msra.mxu0 0
    %547 = vmatpush.bf16.msra.mxu0 0
    %548 = vmatpush.bf16.msra.mxu0 0
    %549 = vmatpush.bf16.msra.mxu0 0
    %550 = vmatpush.bf16.msra.mxu0 0
    %551 = vmatpush.bf16.msra.mxu0 %v159
    %552 = vmatpush.bf16.msra.mxu0 %v158
    %553 = vmatmul.bf16.gmra.mxu0 %v543
    %v554 = vpop.f32.mrf.mxu0
    %v555 = vadd.f32 0.0, %v554
    %v556 = vpop.f32.mrf.mxu0
    %557 = vdwg.mxu0
    %v558 = vadd.f32 %v144, %v555
    %v559 = vxor.u32 %v537, 2147483648
    %v560 = vmul.f32 %v559, 1.442695
    %v561 = vpow.pop %v560
    %v562 = vadd.f32 %v561, 1.0
    %v563 = vrcp.pop %v562
    %v564 = vmul.f32 %v562, %v563
    %v565 = vsub.f32 1.0, %v564
    %v566 = vmul.f32 %v563, %v565
    %v567 = vadd.f32 %v563, %v566
    %vm568 = vweird.f32 %v562
    %vm569 = vweird.f32 %v563
    %vm570 = vmor %vm568, %vm569
    %v571 = vsel %vm570, %v563, %v567
    %v572 = vand.u32 2147483647, %v562
    %vm573 = vcmp.eq.f32.partialorder %v572, 8.507059e+37
    %v574 = vand.u32 %v562, 2147483648
    %v575 = vor.u32 1.1754944e-38, %v574
    %v576 = vsel %vm573, %v575, %v571
    %v577 = vmul.f32 1.0, %v576
    %v578 = vtanh.pop %v537
    %v579 = vmul.f32 %v577, %v514
    %581 = vrot.lane.b32.xlu0 %v578, 64
    %v582 = vpop.permute.xlu0 %581
    %v584 = vmul.f32 %v577, %v582
    %586 = vrot.lane.b32.xlu0 %v584, 32
    %v587 = vpop.permute.xlu0 %586
    %v589 = vadd.f32 %v579, %v587
    %v590 = vtanh.pop %v589
    %592 = vrot.lane.b32.xlu0 %v590, 64
    %v593 = vpop.permute.xlu0 %592
    %v595 = vmul.f32 %v577, %v593
    %v596 = vxor.u32 %v558, 2147483648
    %v597 = vmul.f32 %v596, 1.442695
    %v598 = vpow.pop %v597
    %v599 = vadd.f32 %v598, 1.0
    %v600 = vrcp.pop %v599
    %v601 = vmul.f32 %v599, %v600
    %v602 = vsub.f32 1.0, %v601
    %v603 = vmul.f32 %v600, %v602
    %v604 = vadd.f32 %v600, %v603
    %vm605 = vweird.f32 %v599
    %vm606 = vweird.f32 %v600
    %vm607 = vmor %vm605, %vm606
    %v608 = vsel %vm607, %v600, %v604
    %v609 = vand.u32 2147483647, %v599
    %vm610 = vcmp.eq.f32.partialorder %v609, 8.507059e+37
    %v611 = vand.u32 %v599, 2147483648
    %v612 = vor.u32 1.1754944e-38, %v611
    %v613 = vsel %vm610, %v612, %v608
    %v614 = vmul.f32 1.0, %v613
    %v615 = vtanh.pop %v558
    %v616 = vmul.f32 %v614, %v516
    %618 = vrot.lane.b32.xlu0 %v615, 64
    %v619 = vpop.permute.xlu0 %618
    %v621 = vmul.f32 %v614, %v619
    %623 = vrot.lane.b32.xlu0 %v621, 32
    %v624 = vpop.permute.xlu0 %623
    %v626 = vadd.f32 %v616, %v624
    %v627 = vtanh.pop %v626
    %629 = vrot.lane.b32.xlu0 %v627, 64
    %v630 = vpop.permute.xlu0 %629
    %v632 = vmul.f32 %v614, %v630
    %vm633 = vcmp.gt.s32.totalorder %v266, 3
    %vm634 = vcmp.gt.s32.totalorder %v266, 4
    %v635 = vsel %vm633, %v595, %v513
    %v636 = vsel %vm633, %v589, %v514
    %v637 = vsel %vm634, %v632, %v515
    %v638 = vsel %vm634, %v626, %v516
    %v639 = vpack.c.bf16 %v635, %v635
    %641 = vrot.lane.b32.xlu0 %v639, 32
    %v642 = vpop.permute.xlu0 %641
    %v644 = vsel %vm160, %v642, 0
    %646 = vmatpush.bf16.msra.mxu0 0
    %647 = vmatpush.bf16.msra.mxu0 0
    %648 = vmatpush.bf16.msra.mxu0 0
    %649 = vmatpush.bf16.msra.mxu0 0
    %650 = vmatpush.bf16.msra.mxu0 0
    %651 = vmatpush.bf16.msra.mxu0 0
    %652 = vmatpush.bf16.msra.mxu0 %v153
    %653 = vmatpush.bf16.msra.mxu0 %v152
    %654 = vmatmul.bf16.gmra.mxu0 %v644
    %v655 = vpop.f32.mrf.mxu0
    %v656 = vadd.f32 0.0, %v655
    %v657 = vpop.f32.mrf.mxu0
    %658 = vdwg.mxu0
    %v659 = vadd.f32 %v120, %v656
    %v660 = vpack.c.bf16 %v637, %v637
    %662 = vrot.lane.b32.xlu0 %v660, 32
    %v663 = vpop.permute.xlu0 %662
    %v665 = vsel %vm160, %v663, 0
    %667 = vmatpush.bf16.msra.mxu0 0
    %668 = vmatpush.bf16.msra.mxu0 0
    %669 = vmatpush.bf16.msra.mxu0 0
    %670 = vmatpush.bf16.msra.mxu0 0
    %671 = vmatpush.bf16.msra.mxu0 0
    %672 = vmatpush.bf16.msra.mxu0 0
    %673 = vmatpush.bf16.msra.mxu0 %v159
    %674 = vmatpush.bf16.msra.mxu0 %v158
    %675 = vmatmul.bf16.gmra.mxu0 %v665
    %v676 = vpop.f32.mrf.mxu0
    %v677 = vadd.f32 0.0, %v676
    %v678 = vpop.f32.mrf.mxu0
    %679 = vdwg.mxu0
    %v680 = vadd.f32 %v143, %v677
    %v681 = vxor.u32 %v659, 2147483648
    %v682 = vmul.f32 %v681, 1.442695
    %v683 = vpow.pop %v682
    %v684 = vadd.f32 %v683, 1.0
    %v685 = vrcp.pop %v684
    %v686 = vmul.f32 %v684, %v685
    %v687 = vsub.f32 1.0, %v686
    %v688 = vmul.f32 %v685, %v687
    %v689 = vadd.f32 %v685, %v688
    %vm690 = vweird.f32 %v684
    %vm691 = vweird.f32 %v685
    %vm692 = vmor %vm690, %vm691
    %v693 = vsel %vm692, %v685, %v689
    %v694 = vand.u32 2147483647, %v684
    %vm695 = vcmp.eq.f32.partialorder %v694, 8.507059e+37
    %v696 = vand.u32 %v684, 2147483648
    %v697 = vor.u32 1.1754944e-38, %v696
    %v698 = vsel %vm695, %v697, %v693
    %v699 = vmul.f32 1.0, %v698
    %v700 = vtanh.pop %v659
    %v701 = vmul.f32 %v699, %v636
    %703 = vrot.lane.b32.xlu0 %v700, 64
    %v704 = vpop.permute.xlu0 %703
    %v706 = vmul.f32 %v699, %v704
    %708 = vrot.lane.b32.xlu0 %v706, 32
    %v709 = vpop.permute.xlu0 %708
    %v711 = vadd.f32 %v701, %v709
    %v712 = vtanh.pop %v711
    %714 = vrot.lane.b32.xlu0 %v712, 64
    %v715 = vpop.permute.xlu0 %714
    %v717 = vmul.f32 %v699, %v715
    %v718 = vxor.u32 %v680, 2147483648
    %v719 = vmul.f32 %v718, 1.442695
    %v720 = vpow.pop %v719
    %v721 = vadd.f32 %v720, 1.0
    %v722 = vrcp.pop %v721
    %v723 = vmul.f32 %v721, %v722
    %v724 = vsub.f32 1.0, %v723
    %v725 = vmul.f32 %v722, %v724
    %v726 = vadd.f32 %v722, %v725
    %vm727 = vweird.f32 %v721
    %vm728 = vweird.f32 %v722
    %vm729 = vmor %vm727, %vm728
    %v730 = vsel %vm729, %v722, %v726
    %v731 = vand.u32 2147483647, %v721
    %vm732 = vcmp.eq.f32.partialorder %v731, 8.507059e+37
    %v733 = vand.u32 %v721, 2147483648
    %v734 = vor.u32 1.1754944e-38, %v733
    %v735 = vsel %vm732, %v734, %v730
    %v736 = vmul.f32 1.0, %v735
    %v737 = vtanh.pop %v680
    %v738 = vmul.f32 %v736, %v638
    %740 = vrot.lane.b32.xlu0 %v737, 64
    %v741 = vpop.permute.xlu0 %740
    %v743 = vmul.f32 %v736, %v741
    %745 = vrot.lane.b32.xlu0 %v743, 32
    %v746 = vpop.permute.xlu0 %745
    %v748 = vadd.f32 %v738, %v746
    %v749 = vtanh.pop %v748
    %751 = vrot.lane.b32.xlu0 %v749, 64
    %v752 = vpop.permute.xlu0 %751
    %v754 = vmul.f32 %v736, %v752
    %v755 = vsel %vm634, %v717, %v635
    %v756 = vsel %vm634, %v711, %v636
    %v757 = vsel %vm633, %v754, %v637
    %v758 = vsel %vm633, %v748, %v638
    %v759 = vpack.c.bf16 %v755, %v755
    %761 = vrot.lane.b32.xlu0 %v759, 32
    %v762 = vpop.permute.xlu0 %761
    %v764 = vsel %vm160, %v762, 0
    %766 = vmatpush.bf16.msra.mxu0 0
    %767 = vmatpush.bf16.msra.mxu0 0
    %768 = vmatpush.bf16.msra.mxu0 0
    %769 = vmatpush.bf16.msra.mxu0 0
    %770 = vmatpush.bf16.msra.mxu0 0
    %771 = vmatpush.bf16.msra.mxu0 0
    %772 = vmatpush.bf16.msra.mxu0 %v153
    %773 = vmatpush.bf16.msra.mxu0 %v152
    %774 = vmatmul.bf16.gmra.mxu0 %v764
    %v775 = vpop.f32.mrf.mxu0
    %v776 = vadd.f32 0.0, %v775
    %v777 = vpop.f32.mrf.mxu0
    %778 = vdwg.mxu0
    %v779 = vadd.f32 %v121, %v776
    %v780 = vpack.c.bf16 %v757, %v757
    %782 = vrot.lane.b32.xlu0 %v780, 32
    %v783 = vpop.permute.xlu0 %782
    %v785 = vsel %vm160, %v783, 0
    %787 = vmatpush.bf16.msra.mxu0 0
    %788 = vmatpush.bf16.msra.mxu0 0
    %789 = vmatpush.bf16.msra.mxu0 0
    %790 = vmatpush.bf16.msra.mxu0 0
    %791 = vmatpush.bf16.msra.mxu0 0
    %792 = vmatpush.bf16.msra.mxu0 0
    %793 = vmatpush.bf16.msra.mxu0 %v159
    %794 = vmatpush.bf16.msra.mxu0 %v158
    %795 = vmatmul.bf16.gmra.mxu0 %v785
    %v796 = vpop.f32.mrf.mxu0
    %v797 = vadd.f32 0.0, %v796
    %v798 = vpop.f32.mrf.mxu0
    %799 = vdwg.mxu0
    %v800 = vadd.f32 %v142, %v797
    %v801 = vxor.u32 %v779, 2147483648
    %v802 = vmul.f32 %v801, 1.442695
    %v803 = vpow.pop %v802
    %v804 = vadd.f32 %v803, 1.0
    %v805 = vrcp.pop %v804
    %v806 = vmul.f32 %v804, %v805
    %v807 = vsub.f32 1.0, %v806
    %v808 = vmul.f32 %v805, %v807
    %v809 = vadd.f32 %v805, %v808
    %vm810 = vweird.f32 %v804
    %vm811 = vweird.f32 %v805
    %vm812 = vmor %vm810, %vm811
    %v813 = vsel %vm812, %v805, %v809
    %v814 = vand.u32 2147483647, %v804
    %vm815 = vcmp.eq.f32.partialorder %v814, 8.507059e+37
    %v816 = vand.u32 %v804, 2147483648
    %v817 = vor.u32 1.1754944e-38, %v816
    %v818 = vsel %vm815, %v817, %v813
    %v819 = vmul.f32 1.0, %v818
    %v820 = vtanh.pop %v779
    %v821 = vmul.f32 %v819, %v756
    %823 = vrot.lane.b32.xlu0 %v820, 64
    %v824 = vpop.permute.xlu0 %823
    %v826 = vmul.f32 %v819, %v824
    %828 = vrot.lane.b32.xlu0 %v826, 32
    %v829 = vpop.permute.xlu0 %828
    %v831 = vadd.f32 %v821, %v829
    %v832 = vtanh.pop %v831
    %834 = vrot.lane.b32.xlu0 %v832, 64
    %v835 = vpop.permute.xlu0 %834
    %v837 = vmul.f32 %v819, %v835
    %v838 = vxor.u32 %v800, 2147483648
    %v839 = vmul.f32 %v838, 1.442695
    %v840 = vpow.pop %v839
    %v841 = vadd.f32 %v840, 1.0
    %v842 = vrcp.pop %v841
    %v843 = vmul.f32 %v841, %v842
    %v844 = vsub.f32 1.0, %v843
    %v845 = vmul.f32 %v842, %v844
    %v846 = vadd.f32 %v842, %v845
    %vm847 = vweird.f32 %v841
    %vm848 = vweird.f32 %v842
    %vm849 = vmor %vm847, %vm848
    %v850 = vsel %vm849, %v842, %v846
    %v851 = vand.u32 2147483647, %v841
    %vm852 = vcmp.eq.f32.partialorder %v851, 8.507059e+37
    %v853 = vand.u32 %v841, 2147483648
    %v854 = vor.u32 1.1754944e-38, %v853
    %v855 = vsel %vm852, %v854, %v850
    %v856 = vmul.f32 1.0, %v855
    %v857 = vtanh.pop %v800
    %v858 = vmul.f32 %v856, %v758
    %860 = vrot.lane.b32.xlu0 %v857, 64
    %v861 = vpop.permute.xlu0 %860
    %v863 = vmul.f32 %v856, %v861
    %865 = vrot.lane.b32.xlu0 %v863, 32
    %v866 = vpop.permute.xlu0 %865
    %v868 = vadd.f32 %v858, %v866
    %v869 = vtanh.pop %v868
    %871 = vrot.lane.b32.xlu0 %v869, 64
    %v872 = vpop.permute.xlu0 %871
    %v874 = vmul.f32 %v856, %v872
    %v875 = vsel %vm512, %v837, %v755
    %v876 = vsel %vm512, %v831, %v756
    %v877 = vsel %vm511, %v874, %v757
    %v878 = vsel %vm511, %v868, %v758
    %v879 = vpack.c.bf16 %v875, %v875
    %881 = vrot.lane.b32.xlu0 %v879, 32
    %v882 = vpop.permute.xlu0 %881
    %v884 = vsel %vm160, %v882, 0
    %886 = vmatpush.bf16.msra.mxu0 0
    %887 = vmatpush.bf16.msra.mxu0 0
    %888 = vmatpush.bf16.msra.mxu0 0
    %889 = vmatpush.bf16.msra.mxu0 0
    %890 = vmatpush.bf16.msra.mxu0 0
    %891 = vmatpush.bf16.msra.mxu0 0
    %892 = vmatpush.bf16.msra.mxu0 %v153
    %893 = vmatpush.bf16.msra.mxu0 %v152
    %894 = vmatmul.bf16.gmra.mxu0 %v884
    %v895 = vpop.f32.mrf.mxu0
    %v896 = vadd.f32 0.0, %v895
    %v897 = vpop.f32.mrf.mxu0
    %898 = vdwg.mxu0
    %v899 = vadd.f32 %v122, %v896
    %v900 = vpack.c.bf16 %v877, %v877
    %902 = vrot.lane.b32.xlu0 %v900, 32
    %v903 = vpop.permute.xlu0 %902
    %v905 = vsel %vm160, %v903, 0
    %907 = vmatpush.bf16.msra.mxu0 0
    %908 = vmatpush.bf16.msra.mxu0 0
    %909 = vmatpush.bf16.msra.mxu0 0
    %910 = vmatpush.bf16.msra.mxu0 0
    %911 = vmatpush.bf16.msra.mxu0 0
    %912 = vmatpush.bf16.msra.mxu0 0
    %913 = vmatpush.bf16.msra.mxu0 %v159
    %914 = vmatpush.bf16.msra.mxu0 %v158
    %915 = vmatmul.bf16.gmra.mxu0 %v905
    %v916 = vpop.f32.mrf.mxu0
    %v917 = vadd.f32 0.0, %v916
    %v918 = vpop.f32.mrf.mxu0
    %919 = vdwg.mxu0
    %v920 = vadd.f32 %v141, %v917
    %v921 = vxor.u32 %v899, 2147483648
    %v922 = vmul.f32 %v921, 1.442695
    %v923 = vpow.pop %v922
    %v924 = vadd.f32 %v923, 1.0
    %v925 = vrcp.pop %v924
    %v926 = vmul.f32 %v924, %v925
    %v927 = vsub.f32 1.0, %v926
    %v928 = vmul.f32 %v925, %v927
    %v929 = vadd.f32 %v925, %v928
    %vm930 = vweird.f32 %v924
    %vm931 = vweird.f32 %v925
    %vm932 = vmor %vm930, %vm931
    %v933 = vsel %vm932, %v925, %v929
    %v934 = vand.u32 2147483647, %v924
    %vm935 = vcmp.eq.f32.partialorder %v934, 8.507059e+37
    %v936 = vand.u32 %v924, 2147483648
    %v937 = vor.u32 1.1754944e-38, %v936
    %v938 = vsel %vm935, %v937, %v933
    %v939 = vmul.f32 1.0, %v938
    %v940 = vtanh.pop %v899
    %v941 = vmul.f32 %v939, %v876
    %943 = vrot.lane.b32.xlu0 %v940, 64
    %v944 = vpop.permute.xlu0 %943
    %v946 = vmul.f32 %v939, %v944
    %948 = vrot.lane.b32.xlu0 %v946, 32
    %v949 = vpop.permute.xlu0 %948
    %v951 = vadd.f32 %v941, %v949
    %v952 = vtanh.pop %v951
    %954 = vrot.lane.b32.xlu0 %v952, 64
    %v955 = vpop.permute.xlu0 %954
    %v957 = vmul.f32 %v939, %v955
    %v958 = vxor.u32 %v920, 2147483648
    %v959 = vmul.f32 %v958, 1.442695
    %v960 = vpow.pop %v959
    %v961 = vadd.f32 %v960, 1.0
    %v962 = vrcp.pop %v961
    %v963 = vmul.f32 %v961, %v962
    %v964 = vsub.f32 1.0, %v963
    %v965 = vmul.f32 %v962, %v964
    %v966 = vadd.f32 %v962, %v965
    %vm967 = vweird.f32 %v961
    %vm968 = vweird.f32 %v962
    %vm969 = vmor %vm967, %vm968
    %v970 = vsel %vm969, %v962, %v966
    %v971 = vand.u32 2147483647, %v961
    %vm972 = vcmp.eq.f32.partialorder %v971, 8.507059e+37
    %v973 = vand.u32 %v961, 2147483648
    %v974 = vor.u32 1.1754944e-38, %v973
    %v975 = vsel %vm972, %v974, %v970
    %v976 = vmul.f32 1.0, %v975
    %v977 = vtanh.pop %v920
    %v978 = vmul.f32 %v976, %v878
    %980 = vrot.lane.b32.xlu0 %v977, 64
    %v981 = vpop.permute.xlu0 %980
    %v983 = vmul.f32 %v976, %v981
    %985 = vrot.lane.b32.xlu0 %v983, 32
    %v986 = vpop.permute.xlu0 %985
    %v988 = vadd.f32 %v978, %v986
    %v989 = vtanh.pop %v988
    %991 = vrot.lane.b32.xlu0 %v989, 64
    %v992 = vpop.permute.xlu0 %991
    %v994 = vmul.f32 %v976, %v992
    %v995 = vsel %vm390, %v957, %v875
    %v996 = vsel %vm390, %v951, %v876
    %v997 = vsel %vm389, %v994, %v877
    %v998 = vsel %vm389, %v988, %v878
    %v999 = vpack.c.bf16 %v995, %v995
    %1001 = vrot.lane.b32.xlu0 %v999, 32
    %v1002 = vpop.permute.xlu0 %1001
    %v1004 = vsel %vm160, %v1002, 0
    %1006 = vmatpush.bf16.msra.mxu0 0
    %1007 = vmatpush.bf16.msra.mxu0 0
    %1008 = vmatpush.bf16.msra.mxu0 0
    %1009 = vmatpush.bf16.msra.mxu0 0
    %1010 = vmatpush.bf16.msra.mxu0 0
    %1011 = vmatpush.bf16.msra.mxu0 0
    %1012 = vmatpush.bf16.msra.mxu0 %v153
    %1013 = vmatpush.bf16.msra.mxu0 %v152
    %1014 = vmatmul.bf16.gmra.mxu0 %v1004
    %v1015 = vpop.f32.mrf.mxu0
    %v1016 = vadd.f32 0.0, %v1015
    %v1017 = vpop.f32.mrf.mxu0
    %1018 = vdwg.mxu0
    %v1019 = vadd.f32 %v123, %v1016
    %v1020 = vpack.c.bf16 %v997, %v997
    %1022 = vrot.lane.b32.xlu0 %v1020, 32
    %v1023 = vpop.permute.xlu0 %1022
    %v1025 = vsel %vm160, %v1023, 0
    %1027 = vmatpush.bf16.msra.mxu0 0
    %1028 = vmatpush.bf16.msra.mxu0 0
    %1029 = vmatpush.bf16.msra.mxu0 0
    %1030 = vmatpush.bf16.msra.mxu0 0
    %1031 = vmatpush.bf16.msra.mxu0 0
    %1032 = vmatpush.bf16.msra.mxu0 0
    %1033 = vmatpush.bf16.msra.mxu0 %v159
    %1034 = vmatpush.bf16.msra.mxu0 %v158
    %1035 = vmatmul.bf16.gmra.mxu0 %v1025
    %v1036 = vpop.f32.mrf.mxu0
    %v1037 = vadd.f32 0.0, %v1036
    %v1038 = vpop.f32.mrf.mxu0
    %1039 = vdwg.mxu0
    %v1040 = vadd.f32 %v140, %v1037
    %v1041 = vxor.u32 %v1019, 2147483648
    %v1042 = vmul.f32 %v1041, 1.442695
    %v1043 = vpow.pop %v1042
    %v1044 = vadd.f32 %v1043, 1.0
    %v1045 = vrcp.pop %v1044
    %v1046 = vmul.f32 %v1044, %v1045
    %v1047 = vsub.f32 1.0, %v1046
    %v1048 = vmul.f32 %v1045, %v1047
    %v1049 = vadd.f32 %v1045, %v1048
    %vm1050 = vweird.f32 %v1044
    %vm1051 = vweird.f32 %v1045
    %vm1052 = vmor %vm1050, %vm1051
    %v1053 = vsel %vm1052, %v1045, %v1049
    %v1054 = vand.u32 2147483647, %v1044
    %vm1055 = vcmp.eq.f32.partialorder %v1054, 8.507059e+37
    %v1056 = vand.u32 %v1044, 2147483648
    %v1057 = vor.u32 1.1754944e-38, %v1056
    %v1058 = vsel %vm1055, %v1057, %v1053
    %v1059 = vmul.f32 1.0, %v1058
    %v1060 = vtanh.pop %v1019
    %v1061 = vmul.f32 %v1059, %v996
    %1063 = vrot.lane.b32.xlu0 %v1060, 64
    %v1064 = vpop.permute.xlu0 %1063
    %v1066 = vmul.f32 %v1059, %v1064
    %1068 = vrot.lane.b32.xlu0 %v1066, 32
    %v1069 = vpop.permute.xlu0 %1068
    %v1071 = vadd.f32 %v1061, %v1069
    %v1072 = vtanh.pop %v1071
    %1074 = vrot.lane.b32.xlu0 %v1072, 64
    %v1075 = vpop.permute.xlu0 %1074
    %v1077 = vmul.f32 %v1059, %v1075
    %v1078 = vxor.u32 %v1040, 2147483648
    %v1079 = vmul.f32 %v1078, 1.442695
    %v1080 = vpow.pop %v1079
    %v1081 = vadd.f32 %v1080, 1.0
    %v1082 = vrcp.pop %v1081
    %v1083 = vmul.f32 %v1081, %v1082
    %v1084 = vsub.f32 1.0, %v1083
    %v1085 = vmul.f32 %v1082, %v1084
    %v1086 = vadd.f32 %v1082, %v1085
    %vm1087 = vweird.f32 %v1081
    %vm1088 = vweird.f32 %v1082
    %vm1089 = vmor %vm1087, %vm1088
    %v1090 = vsel %vm1089, %v1082, %v1086
    %v1091 = vand.u32 2147483647, %v1081
    %vm1092 = vcmp.eq.f32.partialorder %v1091, 8.507059e+37
    %v1093 = vand.u32 %v1081, 2147483648
    %v1094 = vor.u32 1.1754944e-38, %v1093
    %v1095 = vsel %vm1092, %v1094, %v1090
    %v1096 = vmul.f32 1.0, %v1095
    %v1097 = vtanh.pop %v1040
    %v1098 = vmul.f32 %v1096, %v998
    %1100 = vrot.lane.b32.xlu0 %v1097, 64
    %v1101 = vpop.permute.xlu0 %1100
    %v1103 = vmul.f32 %v1096, %v1101
    %1105 = vrot.lane.b32.xlu0 %v1103, 32
    %v1106 = vpop.permute.xlu0 %1105
    %v1108 = vadd.f32 %v1098, %v1106
    %v1109 = vtanh.pop %v1108
    %1111 = vrot.lane.b32.xlu0 %v1109, 64
    %v1112 = vpop.permute.xlu0 %1111
    %v1114 = vmul.f32 %v1096, %v1112
    %v1115 = vsel %vm268, %v1077, %v995
    %v1116 = vsel %vm267, %v1114, %v997
    %v1118 = vrot.slane %v1116, 7
    %vm1120 = vcmask 1040384
    %v1121 = vsel %vm1120, %v1115, %v1118
    %v1122 = vmax.f32 %v1121, 0.0
    %v1124 = vrot.slane %v1115, 1
    %v1126 = vsel %vm1120, %v1124, %v1116
    %v1127 = vmax.f32 %v1126, 0.0
    %v1128 = vld [vmem:[%s8] sm:$0xff]
    %v1129 = vld [vmem:[%s8 + $0x8] sm:$0xff]
    %v1130 = vld [vmem:[%s8 + $0x10] sm:$0xff]
    %v1131 = vld [vmem:[%s8 + $0x18] sm:$0xff]
    %v1132 = vld [vmem:[%s8 + $0x20] sm:$0xff]
    %v1133 = vld [vmem:[%s8 + $0x28] sm:$0xff]
    %v1134 = vld [vmem:[%s8 + $0x30] sm:$0xff]
    %v1135 = vld [vmem:[%s8 + $0x38] sm:$0xff]
    %v1136 = vpack.c.bf16 %v1122, %v1122
    %v1137 = vpack.c.bf16 %v1129, %v1128
    %v1138 = vpack.c.bf16 %v1131, %v1130
    %v1139 = vpack.c.bf16 %v1127, %v1127
    %v1140 = vpack.c.bf16 %v1133, %v1132
    %v1141 = vpack.c.bf16 %v1135, %v1134
    %1143 = vrot.lane.b32.xlu0 %v1139, 32
    %v1144 = vpop.permute.xlu0 %1143
    %v1146 = vsel %vm160, %v1144, 0
    %1148 = vmatpush.bf16.msra.mxu0 0
    %1149 = vmatpush.bf16.msra.mxu0 0
    %1150 = vmatpush.bf16.msra.mxu0 0
    %1151 = vmatpush.bf16.msra.mxu0 0
    %1152 = vmatpush.bf16.msra.mxu0 0
    %1153 = vmatpush.bf16.msra.mxu0 0
    %1154 = vmatpush.bf16.msra.mxu0 %v1141
    %1155 = vmatpush.bf16.msra.mxu0 %v1140
    %1156 = vmatmul.bf16.gmra.mxu0 %v1146
    %v1157 = vpop.f32.mrf.mxu0
    %v1158 = vadd.f32 0.0, %v1157
    %v1159 = vpop.f32.mrf.mxu0
    %1160 = vdwg.mxu0
    %1162 = vrot.lane.b32.xlu0 %v1136, 32
    %v1163 = vpop.permute.xlu0 %1162
    %v1165 = vsel %vm160, %v1163, 0
    %1167 = vmatpush.bf16.msra.mxu0 0
    %1168 = vmatpush.bf16.msra.mxu0 0
    %1169 = vmatpush.bf16.msra.mxu0 0
    %1170 = vmatpush.bf16.msra.mxu0 0
    %1171 = vmatpush.bf16.msra.mxu0 0
    %1172 = vmatpush.bf16.msra.mxu0 0
    %1173 = vmatpush.bf16.msra.mxu0 %v1138
    %1174 = vmatpush.bf16.msra.mxu0 %v1137
    %1175 = vmatmul.bf16.gmra.mxu0 %v1165
    %v1176 = vpop.f32.mrf.mxu0
    %v1177 = vadd.f32 %v1158, %v1176
    %v1178 = vpop.f32.mrf.mxu0
    %1179 = vdwg.mxu0
    %v1180 = vld [vmem:[%s9] sm:$0x1]
    %v1182 = vperm.slane %v1180, 0
    %v1184 = vadd.f32 %v1177, %v1182
    %vm1185 = vcmask 254976
    %1186 = vst.msk [vmem:[#allocation3] sm:$0x3] %vm1185, %v1184
    // Predicated region
    $region42: #{tpu_custom_call.1} parent=1 // pred_check
      _
    $region43: #{tpu_custom_call.1} parent=1 // pred_check_branch
      %1188 = sbr.rel (0) target = $region45
    $region44: #{tpu_custom_call.1} parent=1 // pred_region
      %1190 = vsyncadd [#allocation4], 0
      %s1192 = sshll.u32 [#allocation3], 4
      %s1193 = int_to_ptr.vmem [resolvable:$true] %s1192
      %s1194 = sshll.u32 %s10, 4
      %s1195 = int_to_ptr.hbm [resolvable:$true] %s1194
      %1197 = dma.vmem_to_hbm [thread:$0]  %s1193, 32, %s1195, [#allocation4]
    $region45: #{tpu_custom_call.1} parent=1 // pred_fallthru
      _
    // Predicated region
    $region46: #{tpu_custom_call.1} parent=1 // pred_check
      _
    $region47: #{tpu_custom_call.1} parent=1 // pred_check_branch
      %1199 = sbr.rel (0) target = $region49
    $region48: #{tpu_custom_call.1} parent=1 // pred_region
      %1201 = dma.done [#allocation4], 32
    $region49: #{tpu_custom_call.1} parent=1 // pred_fallthru
      _
    %1202 = vsyncpa [#allocation4], 1

</llo_original>
